<compile_context>
chip_gen: v5e
topology: v5e:2x2
jax: 0.10.0
libtpu: 0.0.40
codegen_flags: <defaults>
</compile_context>

<pallas_src>
import functools

import jax
import jax.numpy as jnp
from jax import lax
from jax.experimental import pallas as pl
from jax.experimental.pallas import tpu as pltpu


def _conv_kernel(cur_ref, nxt_ref, w_ref, b_ref, o_ref, buf_ref, patch_ref,
                 *, offs, tm, cin):
    """One output column-tile: build folded im2col patch in VMEM, one MXU dot."""
    # Stage current tile + halo (next tile) contiguously: (Cin, 2*tm).
    buf_ref[:, :tm] = cur_ref[...]
    buf_ref[:, tm:] = nxt_ref[...]

    # Folded im2col: row block k of the patch is the input shifted by the k-th
    # kernel offset (static slices -> on-chip copies only, no HBM traffic).
    for k, off in enumerate(offs):
        patch_ref[k * cin:(k + 1) * cin, :] = buf_ref[:, off:off + tm]

    # Single lane-dense matmul with the full K^3*Cin contraction, f32 accum.
    res = jnp.dot(w_ref[...], patch_ref[...], preferred_element_type=jnp.float32)
    o_ref[...] = (res + b_ref[...]).astype(o_ref.dtype)


@functools.partial(jax.jit, static_argnames=("kernel_size", "tm"))
def channel_code_forward(x, weight, bias, *, kernel_size=3, tm=1024):
    """x: (N, Cin, D, H, W); weight: (K^3, Cin, Cout) [kd,kh,kw order]; bias: (Cout,)."""
    N, Cin, D, H, W = x.shape
    K3, _, Cout = weight.shape
    K = kernel_size
    assert K3 == K * K * K
    assert tm % 128 == 0, "tm must be lane-aligned (multiple of 128)"
    pad = K // 2
    Dp, Hp, Wp = D + 2 * pad, H + 2 * pad, W + 2 * pad

    # Flat-index offsets of the K^3 kernel taps (same kd,kh,kw enumeration as
    # the weight's leading axis).
    offs = tuple(kd * Hp * Wp + kh * Wp + kw
                 for kd in range(K) for kh in range(K) for kw in range(K))
    assert offs[-1] < tm, "tile must cover the K-neighbourhood halo"

    Mp = N * Dp * Hp * Wp
    num_tiles = pl.cdiv(Mp, tm)
    total_cols = (num_tiles + 1) * tm        # +1 tile so the halo block is always valid

    # --- glue: ONE padded, channel-major, flattened copy of the input (no 27x im2col) ---
    xp = jnp.pad(x, ((0, 0), (0, 0), (pad, pad), (pad, pad), (pad, pad)))
    xf = jnp.transpose(xp, (1, 0, 2, 3, 4)).reshape(Cin, Mp)
    xf = jnp.pad(xf, ((0, 0), (0, total_cols - Mp)))

    # weight (K^3, Cin, Cout) -> (Cout, K^3*Cin), matching patch row order k*Cin + ci.
    w2 = jnp.transpose(weight, (2, 0, 1)).reshape(Cout, K3 * Cin)
    b2 = bias.reshape(Cout, 1)

    kern = functools.partial(_conv_kernel, offs=offs, tm=tm, cin=Cin)

    out2 = pl.pallas_call(
        kern,
        out_shape=jax.ShapeDtypeStruct((Cout, num_tiles * tm), x.dtype),
        grid_spec=pltpu.PrefetchScalarGridSpec(
            num_scalar_prefetch=0,
            grid=(num_tiles,),
            in_specs=[
                pl.BlockSpec((Cin, tm), lambda i: (0, i)),           # current tile
                pl.BlockSpec((Cin, tm), lambda i: (0, i + 1)),       # halo (next tile)
                pl.BlockSpec((Cout, K3 * Cin), lambda i: (0, 0)),    # weight, VMEM-resident
                pl.BlockSpec((Cout, 1), lambda i: (0, 0)),           # bias, VMEM-resident
            ],
            out_specs=pl.BlockSpec((Cout, tm), lambda i: (0, i)),    # lane-dense output
            scratch_shapes=[
                pltpu.VMEM((Cin, 2 * tm), x.dtype),                  # staged tile + halo
                pltpu.VMEM((K3 * Cin, tm), x.dtype),                 # folded im2col patch
            ],
        ),
        compiler_params=pltpu.CompilerParams(
            dimension_semantics=("parallel",),
        ),
    )(xf, xf, w2, b2)

    # Keep only valid base positions (interior of the padded grid), back to NCDHW.
    res = out2[:, :Mp].reshape(Cout, N, Dp, Hp, Wp)
    res = res[:, :, :D, :H, :W]
    return jnp.transpose(res, (1, 0, 2, 3, 4))


def _reference(x, weight, bias, kernel_size=3):
    """Dense 3D conv reference via lax (sanity only)."""
    K = kernel_size
    Cin = x.shape[1]
    Cout = weight.shape[-1]
    w = weight.reshape(K, K, K, Cin, Cout)
    w = jnp.transpose(w, (4, 3, 0, 1, 2))
    out = lax.conv_general_dilated(
        x, w, window_strides=(1, 1, 1), padding="SAME",
        dimension_numbers=("NCDHW", "OIDHW", "NCDHW"),
    )
    return out + bias.reshape(1, Cout, 1, 1, 1)


if __name__ == "__main__":
    key = jax.random.PRNGKey(0)
    k_x, k_w, k_b = jax.random.split(key, 3)

    N, Cin, Cout, D, H, W, K = 2, 4, 8, 8, 8, 8, 3

    x = jax.random.normal(k_x, (N, Cin, D, H, W), dtype=jnp.float32)
    weight = jax.random.normal(k_w, (K * K * K, Cin, Cout), dtype=jnp.float32) * 0.1
    bias = jax.random.normal(k_b, (Cout,), dtype=jnp.float32) * 0.1

    out = channel_code_forward(x, weight, bias, kernel_size=K, tm=1024)
    out = jax.block_until_ready(out)

    ref = jax.block_until_ready(_reference(x, weight, bias, kernel_size=K))
    assert out.shape == (N, Cout, D, H, W)
    assert jnp.allclose(out, ref, atol=1e-3, rtol=1e-3), float(
        jnp.max(jnp.abs(out - ref)))

    print("KERNEL_OK")
</pallas_src>

<mosaic_0001>
module attributes {stable_mosaic.version = 11 : i64} {
  func.func @_conv_kernel(%arg0: i32, %arg1: memref<4x1024xf32, #tpu.memory_space<vmem>>, %arg2: memref<4x1024xf32, #tpu.memory_space<vmem>>, %arg3: memref<8x108xf32, #tpu.memory_space<vmem>>, %arg4: memref<8x1xf32, #tpu.memory_space<vmem>>, %arg5: memref<8x1024xf32, #tpu.memory_space<vmem>>, %arg6: memref<4x2048xf32, #tpu.memory_space<vmem>>, %arg7: memref<108x1024xf32, #tpu.memory_space<vmem>>) attributes {dimension_semantics = [#tpu.dimension_semantics<parallel>], iteration_bounds = array<i64: 2>, scalar_prefetch = 0 : i64, scratch_operands = 2 : i64, tpu.core_type = #tpu.core_type<tc>, window_params = [{transform_indices = @transform_0, window_bounds = array<i64: 4, 1024>}, {transform_indices = @transform_1, window_bounds = array<i64: 4, 1024>}, {pipeline_mode = #tpu.pipeline_mode<synchronous>, transform_indices = @transform_2, window_bounds = array<i64: 8, 108>}, {pipeline_mode = #tpu.pipeline_mode<synchronous>, transform_indices = @transform_3, window_bounds = array<i64: 8, 1>}, {transform_indices = @transform_4, window_bounds = array<i64: 8, 1024>}]} {
    %c0 = arith.constant 0 : index
    %c0_0 = arith.constant 0 : index
    %0 = vector.load %arg1[%c0, %c0_0] : memref<4x1024xf32, #tpu.memory_space<vmem>>, vector<4x1024xf32>
    %c0_1 = arith.constant 0 : index
    %c0_2 = arith.constant 0 : index
    %1 = vector.load %arg6[%c0_1, %c0_2] : memref<4x2048xf32, #tpu.memory_space<vmem>>, vector<4x1024xf32>
    tpu.vector_store %arg6[%c0_1, %c0_2], %0 {strides = array<i32>} : memref<4x2048xf32, #tpu.memory_space<vmem>>, vector<4x1024xf32>,
    %c0_3 = arith.constant 0 : index
    %c0_4 = arith.constant 0 : index
    %2 = vector.load %arg2[%c0_3, %c0_4] : memref<4x1024xf32, #tpu.memory_space<vmem>>, vector<4x1024xf32>
    %c0_5 = arith.constant 0 : index
    %c1024 = arith.constant 1024 : index
    %3 = vector.load %arg6[%c0_5, %c1024] : memref<4x2048xf32, #tpu.memory_space<vmem>>, vector<4x1024xf32>
    tpu.vector_store %arg6[%c0_5, %c1024], %2 {strides = array<i32>} : memref<4x2048xf32, #tpu.memory_space<vmem>>, vector<4x1024xf32>,
    %c0_6 = arith.constant 0 : index
    %c0_7 = arith.constant 0 : index
    %4 = vector.load %arg6[%c0_6, %c0_7] : memref<4x2048xf32, #tpu.memory_space<vmem>>, vector<4x1024xf32>
    %c0_8 = arith.constant 0 : index
    %c0_9 = arith.constant 0 : index
    %5 = vector.load %arg7[%c0_8, %c0_9] : memref<108x1024xf32, #tpu.memory_space<vmem>>, vector<4x1024xf32>
    tpu.vector_store %arg7[%c0_8, %c0_9], %4 {strides = array<i32>} : memref<108x1024xf32, #tpu.memory_space<vmem>>, vector<4x1024xf32>,
    %c0_10 = arith.constant 0 : index
    %c1 = arith.constant 1 : index
    %6 = vector.load %arg6[%c0_10, %c1] : memref<4x2048xf32, #tpu.memory_space<vmem>>, vector<4x1024xf32>
    %c4 = arith.constant 4 : index
    %c0_11 = arith.constant 0 : index
    %7 = vector.load %arg7[%c4, %c0_11] : memref<108x1024xf32, #tpu.memory_space<vmem>>, vector<4x1024xf32>
    tpu.vector_store %arg7[%c4, %c0_11], %6 {strides = array<i32>} : memref<108x1024xf32, #tpu.memory_space<vmem>>, vector<4x1024xf32>,
    %c0_12 = arith.constant 0 : index
    %c2 = arith.constant 2 : index
    %8 = vector.load %arg6[%c0_12, %c2] : memref<4x2048xf32, #tpu.memory_space<vmem>>, vector<4x1024xf32>
    %c8 = arith.constant 8 : index
    %c0_13 = arith.constant 0 : index
    %9 = vector.load %arg7[%c8, %c0_13] : memref<108x1024xf32, #tpu.memory_space<vmem>>, vector<4x1024xf32>
    tpu.vector_store %arg7[%c8, %c0_13], %8 {strides = array<i32>} : memref<108x1024xf32, #tpu.memory_space<vmem>>, vector<4x1024xf32>,
    %c0_14 = arith.constant 0 : index
    %c10 = arith.constant 10 : index
    %10 = vector.load %arg6[%c0_14, %c10] : memref<4x2048xf32, #tpu.memory_space<vmem>>, vector<4x1024xf32>
    %c12 = arith.constant 12 : index
    %c0_15 = arith.constant 0 : index
    %11 = vector.load %arg7[%c12, %c0_15] : memref<108x1024xf32, #tpu.memory_space<vmem>>, vector<4x1024xf32>
    tpu.vector_store %arg7[%c12, %c0_15], %10 {strides = array<i32>} : memref<108x1024xf32, #tpu.memory_space<vmem>>, vector<4x1024xf32>,
    %c0_16 = arith.constant 0 : index
    %c11 = arith.constant 11 : index
    %12 = vector.load %arg6[%c0_16, %c11] : memref<4x2048xf32, #tpu.memory_space<vmem>>, vector<4x1024xf32>
    %c16 = arith.constant 16 : index
    %c0_17 = arith.constant 0 : index
    %13 = vector.load %arg7[%c16, %c0_17] : memref<108x1024xf32, #tpu.memory_space<vmem>>, vector<4x1024xf32>
    tpu.vector_store %arg7[%c16, %c0_17], %12 {strides = array<i32>} : memref<108x1024xf32, #tpu.memory_space<vmem>>, vector<4x1024xf32>,
    %c0_18 = arith.constant 0 : index
    %c12_19 = arith.constant 12 : index
    %14 = vector.load %arg6[%c0_18, %c12_19] : memref<4x2048xf32, #tpu.memory_space<vmem>>, vector<4x1024xf32>
    %c20 = arith.constant 20 : index
    %c0_20 = arith.constant 0 : index
    %15 = vector.load %arg7[%c20, %c0_20] : memref<108x1024xf32, #tpu.memory_space<vmem>>, vector<4x1024xf32>
    tpu.vector_store %arg7[%c20, %c0_20], %14 {strides = array<i32>} : memref<108x1024xf32, #tpu.memory_space<vmem>>, vector<4x1024xf32>,
    %c0_21 = arith.constant 0 : index
    %c20_22 = arith.constant 20 : index
    %16 = vector.load %arg6[%c0_21, %c20_22] : memref<4x2048xf32, #tpu.memory_space<vmem>>, vector<4x1024xf32>
    %c24 = arith.constant 24 : index
    %c0_23 = arith.constant 0 : index
    %17 = vector.load %arg7[%c24, %c0_23] : memref<108x1024xf32, #tpu.memory_space<vmem>>, vector<4x1024xf32>
    tpu.vector_store %arg7[%c24, %c0_23], %16 {strides = array<i32>} : memref<108x1024xf32, #tpu.memory_space<vmem>>, vector<4x1024xf32>,
    %c0_24 = arith.constant 0 : index
    %c21 = arith.constant 21 : index
    %18 = vector.load %arg6[%c0_24, %c21] : memref<4x2048xf32, #tpu.memory_space<vmem>>, vector<4x1024xf32>
    %c28 = arith.constant 28 : index
    %c0_25 = arith.constant 0 : index
    %19 = vector.load %arg7[%c28, %c0_25] : memref<108x1024xf32, #tpu.memory_space<vmem>>, vector<4x1024xf32>
    tpu.vector_store %arg7[%c28, %c0_25], %18 {strides = array<i32>} : memref<108x1024xf32, #tpu.memory_space<vmem>>, vector<4x1024xf32>,
    %c0_26 = arith.constant 0 : index
    %c22 = arith.constant 22 : index
    %20 = vector.load %arg6[%c0_26, %c22] : memref<4x2048xf32, #tpu.memory_space<vmem>>, vector<4x1024xf32>
    %c32 = arith.constant 32 : index
    %c0_27 = arith.constant 0 : index
    %21 = vector.load %arg7[%c32, %c0_27] : memref<108x1024xf32, #tpu.memory_space<vmem>>, vector<4x1024xf32>
    tpu.vector_store %arg7[%c32, %c0_27], %20 {strides = array<i32>} : memref<108x1024xf32, #tpu.memory_space<vmem>>, vector<4x1024xf32>,
    %c0_28 = arith.constant 0 : index
    %c100 = arith.constant 100 : index
    %22 = vector.load %arg6[%c0_28, %c100] : memref<4x2048xf32, #tpu.memory_space<vmem>>, vector<4x1024xf32>
    %c36 = arith.constant 36 : index
    %c0_29 = arith.constant 0 : index
    %23 = vector.load %arg7[%c36, %c0_29] : memref<108x1024xf32, #tpu.memory_space<vmem>>, vector<4x1024xf32>
    tpu.vector_store %arg7[%c36, %c0_29], %22 {strides = array<i32>} : memref<108x1024xf32, #tpu.memory_space<vmem>>, vector<4x1024xf32>,
    %c0_30 = arith.constant 0 : index
    %c101 = arith.constant 101 : index
    %24 = vector.load %arg6[%c0_30, %c101] : memref<4x2048xf32, #tpu.memory_space<vmem>>, vector<4x1024xf32>
    %c40 = arith.constant 40 : index
    %c0_31 = arith.constant 0 : index
    %25 = vector.load %arg7[%c40, %c0_31] : memref<108x1024xf32, #tpu.memory_space<vmem>>, vector<4x1024xf32>
    tpu.vector_store %arg7[%c40, %c0_31], %24 {strides = array<i32>} : memref<108x1024xf32, #tpu.memory_space<vmem>>, vector<4x1024xf32>,
    %c0_32 = arith.constant 0 : index
    %c102 = arith.constant 102 : index
    %26 = vector.load %arg6[%c0_32, %c102] : memref<4x2048xf32, #tpu.memory_space<vmem>>, vector<4x1024xf32>
    %c44 = arith.constant 44 : index
    %c0_33 = arith.constant 0 : index
    %27 = vector.load %arg7[%c44, %c0_33] : memref<108x1024xf32, #tpu.memory_space<vmem>>, vector<4x1024xf32>
    tpu.vector_store %arg7[%c44, %c0_33], %26 {strides = array<i32>} : memref<108x1024xf32, #tpu.memory_space<vmem>>, vector<4x1024xf32>,
    %c0_34 = arith.constant 0 : index
    %c110 = arith.constant 110 : index
    %28 = vector.load %arg6[%c0_34, %c110] : memref<4x2048xf32, #tpu.memory_space<vmem>>, vector<4x1024xf32>
    %c48 = arith.constant 48 : index
    %c0_35 = arith.constant 0 : index
    %29 = vector.load %arg7[%c48, %c0_35] : memref<108x1024xf32, #tpu.memory_space<vmem>>, vector<4x1024xf32>
    tpu.vector_store %arg7[%c48, %c0_35], %28 {strides = array<i32>} : memref<108x1024xf32, #tpu.memory_space<vmem>>, vector<4x1024xf32>,
    %c0_36 = arith.constant 0 : index
    %c111 = arith.constant 111 : index
    %30 = vector.load %arg6[%c0_36, %c111] : memref<4x2048xf32, #tpu.memory_space<vmem>>, vector<4x1024xf32>
    %c52 = arith.constant 52 : index
    %c0_37 = arith.constant 0 : index
    %31 = vector.load %arg7[%c52, %c0_37] : memref<108x1024xf32, #tpu.memory_space<vmem>>, vector<4x1024xf32>
    tpu.vector_store %arg7[%c52, %c0_37], %30 {strides = array<i32>} : memref<108x1024xf32, #tpu.memory_space<vmem>>, vector<4x1024xf32>,
    %c0_38 = arith.constant 0 : index
    %c112 = arith.constant 112 : index
    %32 = vector.load %arg6[%c0_38, %c112] : memref<4x2048xf32, #tpu.memory_space<vmem>>, vector<4x1024xf32>
    %c56 = arith.constant 56 : index
    %c0_39 = arith.constant 0 : index
    %33 = vector.load %arg7[%c56, %c0_39] : memref<108x1024xf32, #tpu.memory_space<vmem>>, vector<4x1024xf32>
    tpu.vector_store %arg7[%c56, %c0_39], %32 {strides = array<i32>} : memref<108x1024xf32, #tpu.memory_space<vmem>>, vector<4x1024xf32>,
    %c0_40 = arith.constant 0 : index
    %c120 = arith.constant 120 : index
    %34 = vector.load %arg6[%c0_40, %c120] : memref<4x2048xf32, #tpu.memory_space<vmem>>, vector<4x1024xf32>
    %c60 = arith.constant 60 : index
    %c0_41 = arith.constant 0 : index
    %35 = vector.load %arg7[%c60, %c0_41] : memref<108x1024xf32, #tpu.memory_space<vmem>>, vector<4x1024xf32>
    tpu.vector_store %arg7[%c60, %c0_41], %34 {strides = array<i32>} : memref<108x1024xf32, #tpu.memory_space<vmem>>, vector<4x1024xf32>,
    %c0_42 = arith.constant 0 : index
    %c121 = arith.constant 121 : index
    %36 = vector.load %arg6[%c0_42, %c121] : memref<4x2048xf32, #tpu.memory_space<vmem>>, vector<4x1024xf32>
    %c64 = arith.constant 64 : index
    %c0_43 = arith.constant 0 : index
    %37 = vector.load %arg7[%c64, %c0_43] : memref<108x1024xf32, #tpu.memory_space<vmem>>, vector<4x1024xf32>
    tpu.vector_store %arg7[%c64, %c0_43], %36 {strides = array<i32>} : memref<108x1024xf32, #tpu.memory_space<vmem>>, vector<4x1024xf32>,
    %c0_44 = arith.constant 0 : index
    %c122 = arith.constant 122 : index
    %38 = vector.load %arg6[%c0_44, %c122] : memref<4x2048xf32, #tpu.memory_space<vmem>>, vector<4x1024xf32>
    %c68 = arith.constant 68 : index
    %c0_45 = arith.constant 0 : index
    %39 = vector.load %arg7[%c68, %c0_45] : memref<108x1024xf32, #tpu.memory_space<vmem>>, vector<4x1024xf32>
    tpu.vector_store %arg7[%c68, %c0_45], %38 {strides = array<i32>} : memref<108x1024xf32, #tpu.memory_space<vmem>>, vector<4x1024xf32>,
    %c0_46 = arith.constant 0 : index
    %c200 = arith.constant 200 : index
    %40 = vector.load %arg6[%c0_46, %c200] : memref<4x2048xf32, #tpu.memory_space<vmem>>, vector<4x1024xf32>
    %c72 = arith.constant 72 : index
    %c0_47 = arith.constant 0 : index
    %41 = vector.load %arg7[%c72, %c0_47] : memref<108x1024xf32, #tpu.memory_space<vmem>>, vector<4x1024xf32>
    tpu.vector_store %arg7[%c72, %c0_47], %40 {strides = array<i32>} : memref<108x1024xf32, #tpu.memory_space<vmem>>, vector<4x1024xf32>,
    %c0_48 = arith.constant 0 : index
    %c201 = arith.constant 201 : index
    %42 = vector.load %arg6[%c0_48, %c201] : memref<4x2048xf32, #tpu.memory_space<vmem>>, vector<4x1024xf32>
    %c76 = arith.constant 76 : index
    %c0_49 = arith.constant 0 : index
    %43 = vector.load %arg7[%c76, %c0_49] : memref<108x1024xf32, #tpu.memory_space<vmem>>, vector<4x1024xf32>
    tpu.vector_store %arg7[%c76, %c0_49], %42 {strides = array<i32>} : memref<108x1024xf32, #tpu.memory_space<vmem>>, vector<4x1024xf32>,
    %c0_50 = arith.constant 0 : index
    %c202 = arith.constant 202 : index
    %44 = vector.load %arg6[%c0_50, %c202] : memref<4x2048xf32, #tpu.memory_space<vmem>>, vector<4x1024xf32>
    %c80 = arith.constant 80 : index
    %c0_51 = arith.constant 0 : index
    %45 = vector.load %arg7[%c80, %c0_51] : memref<108x1024xf32, #tpu.memory_space<vmem>>, vector<4x1024xf32>
    tpu.vector_store %arg7[%c80, %c0_51], %44 {strides = array<i32>} : memref<108x1024xf32, #tpu.memory_space<vmem>>, vector<4x1024xf32>,
    %c0_52 = arith.constant 0 : index
    %c210 = arith.constant 210 : index
    %46 = vector.load %arg6[%c0_52, %c210] : memref<4x2048xf32, #tpu.memory_space<vmem>>, vector<4x1024xf32>
    %c84 = arith.constant 84 : index
    %c0_53 = arith.constant 0 : index
    %47 = vector.load %arg7[%c84, %c0_53] : memref<108x1024xf32, #tpu.memory_space<vmem>>, vector<4x1024xf32>
    tpu.vector_store %arg7[%c84, %c0_53], %46 {strides = array<i32>} : memref<108x1024xf32, #tpu.memory_space<vmem>>, vector<4x1024xf32>,
    %c0_54 = arith.constant 0 : index
    %c211 = arith.constant 211 : index
    %48 = vector.load %arg6[%c0_54, %c211] : memref<4x2048xf32, #tpu.memory_space<vmem>>, vector<4x1024xf32>
    %c88 = arith.constant 88 : index
    %c0_55 = arith.constant 0 : index
    %49 = vector.load %arg7[%c88, %c0_55] : memref<108x1024xf32, #tpu.memory_space<vmem>>, vector<4x1024xf32>
    tpu.vector_store %arg7[%c88, %c0_55], %48 {strides = array<i32>} : memref<108x1024xf32, #tpu.memory_space<vmem>>, vector<4x1024xf32>,
    %c0_56 = arith.constant 0 : index
    %c212 = arith.constant 212 : index
    %50 = vector.load %arg6[%c0_56, %c212] : memref<4x2048xf32, #tpu.memory_space<vmem>>, vector<4x1024xf32>
    %c92 = arith.constant 92 : index
    %c0_57 = arith.constant 0 : index
    %51 = vector.load %arg7[%c92, %c0_57] : memref<108x1024xf32, #tpu.memory_space<vmem>>, vector<4x1024xf32>
    tpu.vector_store %arg7[%c92, %c0_57], %50 {strides = array<i32>} : memref<108x1024xf32, #tpu.memory_space<vmem>>, vector<4x1024xf32>,
    %c0_58 = arith.constant 0 : index
    %c220 = arith.constant 220 : index
    %52 = vector.load %arg6[%c0_58, %c220] : memref<4x2048xf32, #tpu.memory_space<vmem>>, vector<4x1024xf32>
    %c96 = arith.constant 96 : index
    %c0_59 = arith.constant 0 : index
    %53 = vector.load %arg7[%c96, %c0_59] : memref<108x1024xf32, #tpu.memory_space<vmem>>, vector<4x1024xf32>
    tpu.vector_store %arg7[%c96, %c0_59], %52 {strides = array<i32>} : memref<108x1024xf32, #tpu.memory_space<vmem>>, vector<4x1024xf32>,
    %c0_60 = arith.constant 0 : index
    %c221 = arith.constant 221 : index
    %54 = vector.load %arg6[%c0_60, %c221] : memref<4x2048xf32, #tpu.memory_space<vmem>>, vector<4x1024xf32>
    %c100_61 = arith.constant 100 : index
    %c0_62 = arith.constant 0 : index
    %55 = vector.load %arg7[%c100_61, %c0_62] : memref<108x1024xf32, #tpu.memory_space<vmem>>, vector<4x1024xf32>
    tpu.vector_store %arg7[%c100_61, %c0_62], %54 {strides = array<i32>} : memref<108x1024xf32, #tpu.memory_space<vmem>>, vector<4x1024xf32>,
    %c0_63 = arith.constant 0 : index
    %c222 = arith.constant 222 : index
    %56 = vector.load %arg6[%c0_63, %c222] : memref<4x2048xf32, #tpu.memory_space<vmem>>, vector<4x1024xf32>
    %c104 = arith.constant 104 : index
    %c0_64 = arith.constant 0 : index
    %57 = vector.load %arg7[%c104, %c0_64] : memref<108x1024xf32, #tpu.memory_space<vmem>>, vector<4x1024xf32>
    tpu.vector_store %arg7[%c104, %c0_64], %56 {strides = array<i32>} : memref<108x1024xf32, #tpu.memory_space<vmem>>, vector<4x1024xf32>,
    %c0_65 = arith.constant 0 : index
    %c0_66 = arith.constant 0 : index
    %58 = vector.load %arg3[%c0_65, %c0_66] : memref<8x108xf32, #tpu.memory_space<vmem>>, vector<8x108xf32>
    %c0_67 = arith.constant 0 : index
    %c0_68 = arith.constant 0 : index
    %59 = vector.load %arg7[%c0_67, %c0_68] : memref<108x1024xf32, #tpu.memory_space<vmem>>, vector<108x1024xf32>
    %cst = arith.constant dense<0.000000e+00> : vector<8x1024xf32>
    %60 = tpu.matmul %58, %59, %cst {dimension_numbers = #tpu.dot_dimension_numbers<[1], [0], [0], [1], [0, 0, 1, 1], [], []>} : vector<8x108xf32>, vector<108x1024xf32>, vector<8x1024xf32> -> vector<8x1024xf32>
    %c0_69 = arith.constant 0 : index
    %c0_70 = arith.constant 0 : index
    %61 = vector.load %arg4[%c0_69, %c0_70] : memref<8x1xf32, #tpu.memory_space<vmem>>, vector<8x1xf32>
    %62 = vector.broadcast %61 : vector<8x1xf32> to vector<8x1024xf32>
    %63 = arith.addf %60, %62 : vector<8x1024xf32>
    %c0_71 = arith.constant 0 : index
    %c0_72 = arith.constant 0 : index
    %64 = vector.load %arg5[%c0_71, %c0_72] : memref<8x1024xf32, #tpu.memory_space<vmem>>, vector<8x1024xf32>
    tpu.vector_store %arg5[%c0_71, %c0_72], %63 {strides = array<i32>} : memref<8x1024xf32, #tpu.memory_space<vmem>>, vector<8x1024xf32>,
    return
  }
  func.func @transform_0(%arg0: i32) -> (i32, i32) {
    %c0_i32 = arith.constant 0 : i32
    %c0_i32_0 = arith.constant 0 : i32
    return %c0_i32, %arg0 : i32, i32
  }
  func.func @transform_1(%arg0: i32) -> (i32, i32) {
    %c1_i32 = arith.constant 1 : i32
    %0 = arith.addi %arg0, %c1_i32 : i32
    %c0_i32 = arith.constant 0 : i32
    %c0_i32_0 = arith.constant 0 : i32
    return %c0_i32, %0 : i32, i32
  }
  func.func @transform_2(%arg0: i32) -> (i32, i32) {
    %c0_i32 = arith.constant 0 : i32
    %c0_i32_0 = arith.constant 0 : i32
    %c0_i32_1 = arith.constant 0 : i32
    return %c0_i32, %c0_i32_0 : i32, i32
  }
  func.func @transform_3(%arg0: i32) -> (i32, i32) {
    %c0_i32 = arith.constant 0 : i32
    %c0_i32_0 = arith.constant 0 : i32
    %c0_i32_1 = arith.constant 0 : i32
    return %c0_i32, %c0_i32_0 : i32, i32
  }
  func.func @transform_4(%arg0: i32) -> (i32, i32) {
    %c0_i32 = arith.constant 0 : i32
    %c0_i32_0 = arith.constant 0 : i32
    return %c0_i32, %arg0 : i32, i32
  }
}

</mosaic_0001>

<llo_original>
// kernel: channel_code_forward.1
$region0: #{channel_code_forward.1}
  #allocation0 [shape = 'u32[]', space=smem, size = 0x4, offset = 0x4, fixed_abs, tag = 'smem constant byte address 0x4 - core index']
  #allocation1 [shape = 'u32[72,128]{1,0:T(1,128)}', space=vmem, size = 0x9000, scoped, tag = 'internal scratch']
  #allocation2 [shape = 'f32[4,2048]{1,0:T(4,128)}', space=vmem, size = 0x8000, scoped, tag = 'scratch operand']
  #allocation3 [shape = 'f32[108,1024]{1,0:T(8,128)}', space=vmem, size = 0x70000, scoped, tag = 'scratch operand']
  %s0 = inlined_call_operand.vmem [shape: f32[4,3072], index: 0, kind: input, shape index: {}, may-alias: {0,1}]
  %s1 = inlined_call_operand.vmem [shape: f32[4,3072], index: 1, kind: input, shape index: {}, may-alias: {0,1}]
  %s2 = inlined_call_operand.vmem [shape: f32[8,108], index: 2, kind: input, shape index: {}]
  %s3 = inlined_call_operand.vmem [shape: f32[8,1], index: 3, kind: input, shape index: {}]
  %s4 = inlined_call_operand.vmem [shape: f32[8,2048], index: 4, kind: output, shape index: {}]
  %s5 = sld [smem:[#allocation0]]
  $region49: #{channel_code_forward.1} parent=0
    _
  %s7 = ssub.s32 1, %s5
  %s8 = scalar_select 0, %s7, %s5
  loop: start=0, step=1, limit=4
  $region2: #{channel_code_forward.1} parent=0 // loop_pre_header
    _
  $region3: #{channel_code_forward.1} parent=0 // loop_header
    %s10 = sphi 0, %s14
    %p11 = scmp.ge.s32.totalorder %s10, 4
    %s20 = sphi 0, %s22
    %s23 = sphi 0, %s20
    %s24 = sphi 0, %s23
    %s40 = sphi 0, %s24
    %s48 = sphi 0, %s50
    %s51 = sphi 0, %s48
    %s52 = sphi 0, %s51
    %s68 = sphi 0, %s52
    %s72 = sphi 0, %s72
    %s74 = sphi 0, %s72
    %s75 = sphi 0, %s74
    %s89 = sphi 0, %s75
    %s93 = sphi 0, %s93
    %s95 = sphi 0, %s93
    %s96 = sphi 0, %s95
    %s110 = sphi 0, %s96
    %s116 = sphi 0, %s118
    %s119 = sphi 0, %s116
    %s120 = sphi 0, %s119
    %s136 = sphi 0, %s120
  $region4: #{channel_code_forward.1} parent=0 // loop_header_branch
    %13 = sbr.rel (%p11) target = $region8
  $region5: #{channel_code_forward.1} parent=0 // loop_body
    %s15 = ssub.s32 %s10, 1
    %s16 = ssub.s32 %s10, 2
    %s17 = sadd.s32 %s10, 1
    %s18 = ssub.s32 %s10, %s17
    %p19 = scmp.eq.s32.totalorder %s18, 0
    %s21 = sadd.s32 %s20, 1
    %s22 = scalar_select %p19, %s20, %s21
    %p25 = pneg %p19
    %p26 = scmp.eq.s32.totalorder %s10, 1
    %p27 = por %p25, %p26
    %p28 = scmp.ne.s32.totalorder %s20, %s23
    %p29 = scmp.eq.s32.totalorder %s10, 0
    %p30 = por %p28, %p29
    %p31 = scmp.ne.s32.totalorder %s20, %s23
    %p32 = scmp.eq.s32.totalorder %s15, 1
    %p33 = por %p31, %p32
    %p34 = scmp.ne.s32.totalorder %s23, %s24
    %p35 = scmp.eq.s32.totalorder %s15, 0
    %p36 = por %p34, %p35
    %p37 = scmp.ne.s32.totalorder %s23, %s24
    %p38 = scmp.eq.s32.totalorder %s16, 1
    %p39 = por %p37, %p38
    %p41 = scmp.ne.s32.totalorder %s24, %s40
    %p42 = scmp.eq.s32.totalorder %s16, 0
    %p43 = por %p41, %p42
    %s44 = sadd.s32 %s10, 1
    %s45 = sadd.s32 %s17, 1
    %s46 = ssub.s32 %s44, %s45
    %p47 = scmp.eq.s32.totalorder %s46, 0
    %s49 = sadd.s32 %s48, 1
    %s50 = scalar_select %p47, %s48, %s49
    %p53 = pneg %p47
    %p54 = scmp.eq.s32.totalorder %s10, 1
    %p55 = por %p53, %p54
    %p56 = scmp.ne.s32.totalorder %s48, %s51
    %p57 = scmp.eq.s32.totalorder %s10, 0
    %p58 = por %p56, %p57
    %p59 = scmp.ne.s32.totalorder %s48, %s51
    %p60 = scmp.eq.s32.totalorder %s15, 1
    %p61 = por %p59, %p60
    %p62 = scmp.ne.s32.totalorder %s51, %s52
    %p63 = scmp.eq.s32.totalorder %s15, 0
    %p64 = por %p62, %p63
    %p65 = scmp.ne.s32.totalorder %s51, %s52
    %p66 = scmp.eq.s32.totalorder %s16, 1
    %p67 = por %p65, %p66
    %p69 = scmp.ne.s32.totalorder %s52, %s68
    %p70 = scmp.eq.s32.totalorder %s16, 0
    %p71 = por %p69, %p70
    %s73 = sadd.s32 %s72, 1
    %p76 = scmp.eq.s32.totalorder %s10, 1
    %p77 = scmp.ne.s32.totalorder %s72, %s74
    %p78 = scmp.eq.s32.totalorder %s10, 0
    %p79 = por %p77, %p78
    %p80 = scmp.ne.s32.totalorder %s72, %s74
    %p81 = scmp.eq.s32.totalorder %s15, 1
    %p82 = por %p80, %p81
    %p83 = scmp.ne.s32.totalorder %s74, %s75
    %p84 = scmp.eq.s32.totalorder %s15, 0
    %p85 = por %p83, %p84
    %p86 = scmp.ne.s32.totalorder %s74, %s75
    %p87 = scmp.eq.s32.totalorder %s16, 1
    %p88 = por %p86, %p87
    %p90 = scmp.ne.s32.totalorder %s75, %s89
    %p91 = scmp.eq.s32.totalorder %s16, 0
    %p92 = por %p90, %p91
    %s94 = sadd.s32 %s93, 1
    %p97 = scmp.eq.s32.totalorder %s10, 1
    %p98 = scmp.ne.s32.totalorder %s93, %s95
    %p99 = scmp.eq.s32.totalorder %s10, 0
    %p100 = por %p98, %p99
    %p101 = scmp.ne.s32.totalorder %s93, %s95
    %p102 = scmp.eq.s32.totalorder %s15, 1
    %p103 = por %p101, %p102
    %p104 = scmp.ne.s32.totalorder %s95, %s96
    %p105 = scmp.eq.s32.totalorder %s15, 0
    %p106 = por %p104, %p105
    %p107 = scmp.ne.s32.totalorder %s95, %s96
    %p108 = scmp.eq.s32.totalorder %s16, 1
    %p109 = por %p107, %p108
    %p111 = scmp.ne.s32.totalorder %s96, %s110
    %p112 = scmp.eq.s32.totalorder %s16, 0
    %p113 = por %p111, %p112
    %s114 = ssub.s32 %s10, %s17
    %p115 = scmp.eq.s32.totalorder %s114, 0
    %s117 = sadd.s32 %s116, 1
    %s118 = scalar_select %p115, %s116, %s117
    %p121 = pneg %p115
    %p122 = scmp.eq.s32.totalorder %s10, 1
    %p123 = por %p121, %p122
    %p124 = scmp.ne.s32.totalorder %s116, %s119
    %p125 = scmp.eq.s32.totalorder %s10, 0
    %p126 = por %p124, %p125
    %p127 = scmp.ne.s32.totalorder %s116, %s119
    %p128 = scmp.eq.s32.totalorder %s15, 1
    %p129 = por %p127, %p128
    %p130 = scmp.ne.s32.totalorder %s119, %s120
    %p131 = scmp.eq.s32.totalorder %s15, 0
    %p132 = por %p130, %p131
    %p133 = scmp.ne.s32.totalorder %s119, %s120
    %p134 = scmp.eq.s32.totalorder %s16, 1
    %p135 = por %p133, %p134
    %p137 = scmp.ne.s32.totalorder %s120, %s136
    %p138 = scmp.eq.s32.totalorder %s16, 0
    %p139 = por %p137, %p138
    %p140 = scmp.le.s32.totalorder 1, %s10
    %p141 = scmp.lt.s32.totalorder %s10, 3
    %p142 = pnand %p140, %p141
    %p143 = pneg %p142
    // Predicated region
    $region9: #{channel_code_forward.1} parent=5 // pred_check
      _
    $region10: #{channel_code_forward.1} parent=5 // pred_check_branch
      %145 = sbr.rel (%p142) target = $region12
    $region11: #{channel_code_forward.1} parent=5 // pred_region
      %s146 = ssub.s32 %s10, 1
      // Predicated region
      $region13: #{channel_code_forward.1} parent=11 // pred_check
        %p147 = pneg %p85
      $region14: #{channel_code_forward.1} parent=11 // pred_check_branch
        %149 = sbr.rel (%p147) target = $region16
      $region15: #{channel_code_forward.1} parent=11 // pred_region
        _
      $region16: #{channel_code_forward.1} parent=11 // pred_fallthru
        _
      // Predicated region
      $region17: #{channel_code_forward.1} parent=11 // pred_check
        %p150 = pneg %p106
      $region18: #{channel_code_forward.1} parent=11 // pred_check_branch
        %152 = sbr.rel (%p150) target = $region20
      $region19: #{channel_code_forward.1} parent=11 // pred_region
        _
      $region20: #{channel_code_forward.1} parent=11 // pred_fallthru
        _
    $region12: #{channel_code_forward.1} parent=5 // pred_fallthru
      _
    %p153 = scmp.lt.s32.totalorder %s10, 2
    // Predicated region
    $region21: #{channel_code_forward.1} parent=5 // pred_check
      %p154 = pneg %p153
    $region22: #{channel_code_forward.1} parent=5 // pred_check_branch
      %156 = sbr.rel (%p154) target = $region24
    $region23: #{channel_code_forward.1} parent=5 // pred_region
      // Predicated region
      $region25: #{channel_code_forward.1} parent=23 // pred_check
        %p157 = pneg %p30
      $region26: #{channel_code_forward.1} parent=23 // pred_check_branch
        %159 = sbr.rel (%p157) target = $region28
      $region27: #{channel_code_forward.1} parent=23 // pred_region
        %s160 = smul.u32 8, %s10
        %p161 = scmp.lt.s32.totalorder %s160, 23
        %s162 = scalar_select %p161, %s160, 23
        %s163 = smul.addr %s162, 4
        %s164 = scalar_lea.vmem %s0, %s163
        %s165 = smul.u32 8, %s10
      $region28: #{channel_code_forward.1} parent=23 // pred_fallthru
        _
      // Predicated region
      $region29: #{channel_code_forward.1} parent=23 // pred_check
        %p166 = pneg %p58
      $region30: #{channel_code_forward.1} parent=23 // pred_check_branch
        %168 = sbr.rel (%p166) target = $region32
      $region31: #{channel_code_forward.1} parent=23 // pred_region
        %s169 = sadd.s32 %s10, 1
        %s170 = smul.u32 8, %s169
        %p171 = scmp.lt.s32.totalorder %s170, 23
        %s172 = scalar_select %p171, %s170, 23
        %s173 = smul.addr %s172, 4
        %s174 = scalar_lea.vmem %s1, %s173
        %s175 = sadd.s32 %s10, 1
        %s176 = smul.u32 8, %s175
      $region32: #{channel_code_forward.1} parent=23 // pred_fallthru
        _
    $region24: #{channel_code_forward.1} parent=5 // pred_fallthru
      _
    %p177 = scmp.le.s32.totalorder 1, %s10
    %p178 = scmp.lt.s32.totalorder %s10, 3
    %p179 = pnand %p177, %p178
    %p180 = pneg %p179
    // Predicated region
    $region33: #{channel_code_forward.1} parent=5 // pred_check
      _
    $region34: #{channel_code_forward.1} parent=5 // pred_check_branch
      %182 = sbr.rel (%p179) target = $region36
    $region35: #{channel_code_forward.1} parent=5 // pred_region
      %s183 = ssub.s32 %s10, 1
      %s184 = smul.u32 8, %s15
      %p185 = scmp.lt.s32.totalorder %s184, 23
      %s186 = scalar_select %p185, %s184, 23
      %s187 = smul.addr %s186, 4
      %s188 = scalar_lea.vmem %s0, %s187
      %p189 = pneg %p36
      %p190 = pneg %p33
      %s191 = sadd.s32 %s15, 1
      %s192 = smul.u32 8, %s191
      %p193 = scmp.lt.s32.totalorder %s192, 23
      %s194 = scalar_select %p193, %s192, 23
      %s195 = smul.addr %s194, 4
      %s196 = scalar_lea.vmem %s1, %s195
      %p197 = pneg %p64
      %p198 = pneg %p61
      %p199 = pneg %p85
      %p200 = pneg %p82
      %p201 = pneg %p106
      %p202 = pneg %p103
      %p203 = pneg %p132
      %p204 = pneg %p129
      %s205 = smul.u32 8, %s15
      %p206 = scmp.lt.s32.totalorder %s205, 15
      %s207 = scalar_select %p206, %s205, 15
      %s208 = smul.addr %s207, 8
      %s209 = scalar_lea.vmem %s4, %s208
      %s210 = smul.u32 8, %s15
      %p211 = scmp.lt.s32.totalorder %s210, 23
      %s212 = scalar_select %p211, %s210, 23
      %s213 = smul.addr %s212, 4
      %s214 = scalar_lea.vmem %s0, %s213
      %s215 = smul.u32 8, %s15
      %s216 = sadd.s32 %s15, 1
      %s217 = smul.u32 8, %s216
      %p218 = scmp.lt.s32.totalorder %s217, 23
      %s219 = scalar_select %p218, %s217, 23
      %s220 = smul.addr %s219, 4
      %s221 = scalar_lea.vmem %s1, %s220
      %s222 = sadd.s32 %s15, 1
      %s223 = smul.u32 8, %s222
      %s224 = smul.u32 8, %s15
      %p225 = scmp.lt.s32.totalorder %s224, 15
      %s226 = scalar_select %p225, %s224, 15
      %s227 = smul.addr %s226, 8
      %s228 = scalar_lea.vmem %s4, %s227
      %s229 = smul.u32 8, %s15
      %v230 = vld [vmem:[%s214] sm:$0xff]
      %v231 = vld [vmem:[%s214 + $0x8] sm:$0xff]
      %v232 = vld [vmem:[%s214 + $0x10] sm:$0xff]
      %v233 = vld [vmem:[%s214 + $0x18] sm:$0xff]
      %234 = vst [vmem:[#allocation2] sm:$0xff] %v230
      %235 = vst [vmem:[#allocation2 + $0x8] sm:$0xff] %v231
      %236 = vst [vmem:[#allocation2 + $0x10] sm:$0xff] %v232
      %237 = vst [vmem:[#allocation2 + $0x18] sm:$0xff] %v233
      %v238 = vld [vmem:[%s221] sm:$0xff]
      %v239 = vld [vmem:[%s221 + $0x8] sm:$0xff]
      %v240 = vld [vmem:[%s221 + $0x10] sm:$0xff]
      %v241 = vld [vmem:[%s221 + $0x18] sm:$0xff]
      %242 = vst [vmem:[#allocation2 + $0x20] sm:$0xff] %v238
      %243 = vst [vmem:[#allocation2 + $0x28] sm:$0xff] %v239
      %244 = vst [vmem:[#allocation2 + $0x30] sm:$0xff] %v240
      %245 = vst [vmem:[#allocation2 + $0x38] sm:$0xff] %v241
      %v246 = vld [vmem:[#allocation2] sm:$0xff]
      %v247 = vld [vmem:[#allocation2 + $0x8] sm:$0xff]
      %v248 = vld [vmem:[#allocation2 + $0x10] sm:$0xff]
      %v249 = vld [vmem:[#allocation2 + $0x18] sm:$0xff]
      %254 = vst [vmem:[#allocation1] ss:$2 sm:$0xff] %v246
      %s255 = scalar_lea.vmem [#allocation1], 16
      %256 = vst [vmem:[%s255] ss:$2 sm:$0xff] %v247
      %s257 = scalar_lea.vmem [#allocation1], 32
      %258 = vst [vmem:[%s257] ss:$2 sm:$0xff] %v248
      %s259 = scalar_lea.vmem [#allocation1], 48
      %260 = vst [vmem:[%s259] ss:$2 sm:$0xff] %v249
      %v261 = vld.sshfl [vmem:[#allocation1] sm:$0xff pattern:$0x75316420]
      %v262 = vld.sshfl [vmem:[#allocation1 + $0x8] sm:$0xff pattern:$0x75316420]
      %v263 = vld.sshfl [vmem:[#allocation1 + $0x10] sm:$0xff pattern:$0x75316420]
      %v264 = vld.sshfl [vmem:[#allocation1 + $0x18] sm:$0xff pattern:$0x75316420]
      %v265 = vld.sshfl [vmem:[#allocation1 + $0x20] sm:$0xff pattern:$0x75316420]
      %v266 = vld.sshfl [vmem:[#allocation1 + $0x28] sm:$0xff pattern:$0x75316420]
      %v267 = vld.sshfl [vmem:[#allocation1 + $0x30] sm:$0xff pattern:$0x75316420]
      %v268 = vld.sshfl [vmem:[#allocation1 + $0x38] sm:$0xff pattern:$0x75316420]
      %277 = vst [vmem:[#allocation3] sm:$0xf] %v261
      %278 = vst [vmem:[#allocation3 + $0x8] sm:$0xf] %v262
      %279 = vst [vmem:[#allocation3 + $0x10] sm:$0xf] %v263
      %280 = vst [vmem:[#allocation3 + $0x18] sm:$0xf] %v264
      %281 = vst [vmem:[#allocation3 + $0x20] sm:$0xf] %v265
      %282 = vst [vmem:[#allocation3 + $0x28] sm:$0xf] %v266
      %283 = vst [vmem:[#allocation3 + $0x30] sm:$0xf] %v267
      %284 = vst [vmem:[#allocation3 + $0x38] sm:$0xf] %v268
      %v285 = vld [vmem:[#allocation2] sm:$0xff]
      %v286 = vld [vmem:[#allocation2 + $0x8] sm:$0xff]
      %v287 = vld [vmem:[#allocation2 + $0x10] sm:$0xff]
      %v288 = vld [vmem:[#allocation2 + $0x18] sm:$0xff]
      %v289 = vld [vmem:[#allocation2 + $0x20] sm:$0xf]
      %s295 = scalar_lea.vmem [#allocation1], 1
      %296 = vst [vmem:[%s295] ss:$2 sm:$0xff] %v285
      %s297 = scalar_lea.vmem [#allocation1], 17
      %298 = vst [vmem:[%s297] ss:$2 sm:$0xff] %v286
      %s299 = scalar_lea.vmem [#allocation1], 33
      %300 = vst [vmem:[%s299] ss:$2 sm:$0xff] %v287
      %s301 = scalar_lea.vmem [#allocation1], 49
      %302 = vst [vmem:[%s301] ss:$2 sm:$0xff] %v288
      %v303 = vld.sshfl [vmem:[#allocation1] sm:$0xff pattern:$0x75316420]
      %v304 = vld.sshfl [vmem:[#allocation1 + $0x8] sm:$0xff pattern:$0x75316420]
      %v305 = vld.sshfl [vmem:[#allocation1 + $0x10] sm:$0xff pattern:$0x75316420]
      %v306 = vld.sshfl [vmem:[#allocation1 + $0x18] sm:$0xff pattern:$0x75316420]
      %v307 = vld.sshfl [vmem:[#allocation1 + $0x20] sm:$0xff pattern:$0x75316420]
      %v308 = vld.sshfl [vmem:[#allocation1 + $0x28] sm:$0xff pattern:$0x75316420]
      %v309 = vld.sshfl [vmem:[#allocation1 + $0x30] sm:$0xff pattern:$0x75316420]
      %v310 = vld.sshfl [vmem:[#allocation1 + $0x38] sm:$0xff pattern:$0x75316420]
      %311 = vst [vmem:[%s295] ss:$2 sm:$0xff] %v289
      %v312 = vld.sshfl [vmem:[#allocation1] sm:$0xff pattern:$0x75316420]
      %313 = vrot.lane.b32.xlu0 %v303, 127
      %v314 = vpop.permute.xlu0 %313
      %315 = vrot.lane.b32.xlu0 %v304, 127
      %v316 = vpop.permute.xlu0 %315
      %317 = vrot.lane.b32.xlu0 %v305, 127
      %v318 = vpop.permute.xlu0 %317
      %319 = vrot.lane.b32.xlu0 %v306, 127
      %v320 = vpop.permute.xlu0 %319
      %321 = vrot.lane.b32.xlu0 %v307, 127
      %v322 = vpop.permute.xlu0 %321
      %323 = vrot.lane.b32.xlu0 %v308, 127
      %v324 = vpop.permute.xlu0 %323
      %325 = vrot.lane.b32.xlu0 %v309, 127
      %v326 = vpop.permute.xlu0 %325
      %327 = vrot.lane.b32.xlu0 %v310, 127
      %v328 = vpop.permute.xlu0 %327
      %329 = vrot.lane.b32.xlu0 %v312, 127
      %v330 = vpop.permute.xlu0 %329
      %vm331 = vcmask 1039360
      %v332 = vsel %vm331, %v314, %v316
      %v333 = vsel %vm331, %v316, %v318
      %v334 = vsel %vm331, %v318, %v320
      %v335 = vsel %vm331, %v320, %v322
      %v336 = vsel %vm331, %v322, %v324
      %v337 = vsel %vm331, %v324, %v326
      %v338 = vsel %vm331, %v326, %v328
      %v339 = vsel %vm331, %v328, %v330
      %348 = vst [vmem:[#allocation3] sm:$0xf0] %v332
      %349 = vst [vmem:[#allocation3 + $0x8] sm:$0xf0] %v333
      %350 = vst [vmem:[#allocation3 + $0x10] sm:$0xf0] %v334
      %351 = vst [vmem:[#allocation3 + $0x18] sm:$0xf0] %v335
      %352 = vst [vmem:[#allocation3 + $0x20] sm:$0xf0] %v336
      %353 = vst [vmem:[#allocation3 + $0x28] sm:$0xf0] %v337
      %354 = vst [vmem:[#allocation3 + $0x30] sm:$0xf0] %v338
      %355 = vst [vmem:[#allocation3 + $0x38] sm:$0xf0] %v339
      %v356 = vld [vmem:[#allocation2] sm:$0xff]
      %v357 = vld [vmem:[#allocation2 + $0x8] sm:$0xff]
      %v358 = vld [vmem:[#allocation2 + $0x10] sm:$0xff]
      %v359 = vld [vmem:[#allocation2 + $0x18] sm:$0xff]
      %v360 = vld [vmem:[#allocation2 + $0x20] sm:$0xf]
      %366 = vst [vmem:[#allocation1] ss:$2 sm:$0xff] %v356
      %s367 = scalar_lea.vmem [#allocation1], 16
      %368 = vst [vmem:[%s367] ss:$2 sm:$0xff] %v357
      %s369 = scalar_lea.vmem [#allocation1], 32
      %370 = vst [vmem:[%s369] ss:$2 sm:$0xff] %v358
      %s371 = scalar_lea.vmem [#allocation1], 48
      %372 = vst [vmem:[%s371] ss:$2 sm:$0xff] %v359
      %v373 = vld.sshfl [vmem:[#allocation1] sm:$0xff pattern:$0x75316420]
      %v374 = vld.sshfl [vmem:[#allocation1 + $0x8] sm:$0xff pattern:$0x75316420]
      %v375 = vld.sshfl [vmem:[#allocation1 + $0x10] sm:$0xff pattern:$0x75316420]
      %v376 = vld.sshfl [vmem:[#allocation1 + $0x18] sm:$0xff pattern:$0x75316420]
      %v377 = vld.sshfl [vmem:[#allocation1 + $0x20] sm:$0xff pattern:$0x75316420]
      %v378 = vld.sshfl [vmem:[#allocation1 + $0x28] sm:$0xff pattern:$0x75316420]
      %v379 = vld.sshfl [vmem:[#allocation1 + $0x30] sm:$0xff pattern:$0x75316420]
      %v380 = vld.sshfl [vmem:[#allocation1 + $0x38] sm:$0xff pattern:$0x75316420]
      %381 = vst [vmem:[#allocation1] ss:$2 sm:$0xff] %v360
      %v382 = vld.sshfl [vmem:[#allocation1] sm:$0xff pattern:$0x75316420]
      %383 = vrot.lane.b32.xlu0 %v373, 126
      %v384 = vpop.permute.xlu0 %383
      %385 = vrot.lane.b32.xlu0 %v374, 126
      %v386 = vpop.permute.xlu0 %385
      %387 = vrot.lane.b32.xlu0 %v375, 126
      %v388 = vpop.permute.xlu0 %387
      %389 = vrot.lane.b32.xlu0 %v376, 126
      %v390 = vpop.permute.xlu0 %389
      %391 = vrot.lane.b32.xlu0 %v377, 126
      %v392 = vpop.permute.xlu0 %391
      %393 = vrot.lane.b32.xlu0 %v378, 126
      %v394 = vpop.permute.xlu0 %393
      %395 = vrot.lane.b32.xlu0 %v379, 126
      %v396 = vpop.permute.xlu0 %395
      %397 = vrot.lane.b32.xlu0 %v380, 126
      %v398 = vpop.permute.xlu0 %397
      %399 = vrot.lane.b32.xlu0 %v382, 126
      %v400 = vpop.permute.xlu0 %399
      %vm401 = vcmask 1031168
      %v402 = vsel %vm401, %v384, %v386
      %v403 = vsel %vm401, %v386, %v388
      %v404 = vsel %vm401, %v388, %v390
      %v405 = vsel %vm401, %v390, %v392
      %v406 = vsel %vm401, %v392, %v394
      %v407 = vsel %vm401, %v394, %v396
      %v408 = vsel %vm401, %v396, %v398
      %v409 = vsel %vm401, %v398, %v400
      %418 = vst [vmem:[#allocation3 + $0x40] sm:$0xf] %v402
      %419 = vst [vmem:[#allocation3 + $0x48] sm:$0xf] %v403
      %420 = vst [vmem:[#allocation3 + $0x50] sm:$0xf] %v404
      %421 = vst [vmem:[#allocation3 + $0x58] sm:$0xf] %v405
      %422 = vst [vmem:[#allocation3 + $0x60] sm:$0xf] %v406
      %423 = vst [vmem:[#allocation3 + $0x68] sm:$0xf] %v407
      %424 = vst [vmem:[#allocation3 + $0x70] sm:$0xf] %v408
      %425 = vst [vmem:[#allocation3 + $0x78] sm:$0xf] %v409
      %v426 = vld [vmem:[#allocation2] sm:$0xff]
      %v427 = vld [vmem:[#allocation2 + $0x8] sm:$0xff]
      %v428 = vld [vmem:[#allocation2 + $0x10] sm:$0xff]
      %v429 = vld [vmem:[#allocation2 + $0x18] sm:$0xff]
      %v430 = vld [vmem:[#allocation2 + $0x20] sm:$0xf]
      %s436 = scalar_lea.vmem [#allocation1], 1
      %437 = vst [vmem:[%s436] ss:$2 sm:$0xff] %v426
      %s438 = scalar_lea.vmem [#allocation1], 17
      %439 = vst [vmem:[%s438] ss:$2 sm:$0xff] %v427
      %s440 = scalar_lea.vmem [#allocation1], 33
      %441 = vst [vmem:[%s440] ss:$2 sm:$0xff] %v428
      %s442 = scalar_lea.vmem [#allocation1], 49
      %443 = vst [vmem:[%s442] ss:$2 sm:$0xff] %v429
      %v444 = vld.sshfl [vmem:[#allocation1] sm:$0xff pattern:$0x75316420]
      %v445 = vld.sshfl [vmem:[#allocation1 + $0x8] sm:$0xff pattern:$0x75316420]
      %v446 = vld.sshfl [vmem:[#allocation1 + $0x10] sm:$0xff pattern:$0x75316420]
      %v447 = vld.sshfl [vmem:[#allocation1 + $0x18] sm:$0xff pattern:$0x75316420]
      %v448 = vld.sshfl [vmem:[#allocation1 + $0x20] sm:$0xff pattern:$0x75316420]
      %v449 = vld.sshfl [vmem:[#allocation1 + $0x28] sm:$0xff pattern:$0x75316420]
      %v450 = vld.sshfl [vmem:[#allocation1 + $0x30] sm:$0xff pattern:$0x75316420]
      %v451 = vld.sshfl [vmem:[#allocation1 + $0x38] sm:$0xff pattern:$0x75316420]
      %452 = vst [vmem:[%s436] ss:$2 sm:$0xff] %v430
      %v453 = vld.sshfl [vmem:[#allocation1] sm:$0xff pattern:$0x75316420]
      %454 = vrot.lane.b32.xlu0 %v444, 118
      %v455 = vpop.permute.xlu0 %454
      %456 = vrot.lane.b32.xlu0 %v445, 118
      %v457 = vpop.permute.xlu0 %456
      %458 = vrot.lane.b32.xlu0 %v446, 118
      %v459 = vpop.permute.xlu0 %458
      %460 = vrot.lane.b32.xlu0 %v447, 118
      %v461 = vpop.permute.xlu0 %460
      %462 = vrot.lane.b32.xlu0 %v448, 118
      %v463 = vpop.permute.xlu0 %462
      %464 = vrot.lane.b32.xlu0 %v449, 118
      %v465 = vpop.permute.xlu0 %464
      %466 = vrot.lane.b32.xlu0 %v450, 118
      %v467 = vpop.permute.xlu0 %466
      %468 = vrot.lane.b32.xlu0 %v451, 118
      %v469 = vpop.permute.xlu0 %468
      %470 = vrot.lane.b32.xlu0 %v453, 118
      %v471 = vpop.permute.xlu0 %470
      %vm472 = vcmask 965632
      %v473 = vsel %vm472, %v455, %v457
      %v474 = vsel %vm472, %v457, %v459
      %v475 = vsel %vm472, %v459, %v461
      %v476 = vsel %vm472, %v461, %v463
      %v477 = vsel %vm472, %v463, %v465
      %v478 = vsel %vm472, %v465, %v467
      %v479 = vsel %vm472, %v467, %v469
      %v480 = vsel %vm472, %v469, %v471
      %489 = vst [vmem:[#allocation3 + $0x40] sm:$0xf0] %v473
      %490 = vst [vmem:[#allocation3 + $0x48] sm:$0xf0] %v474
      %491 = vst [vmem:[#allocation3 + $0x50] sm:$0xf0] %v475
      %492 = vst [vmem:[#allocation3 + $0x58] sm:$0xf0] %v476
      %493 = vst [vmem:[#allocation3 + $0x60] sm:$0xf0] %v477
      %494 = vst [vmem:[#allocation3 + $0x68] sm:$0xf0] %v478
      %495 = vst [vmem:[#allocation3 + $0x70] sm:$0xf0] %v479
      %496 = vst [vmem:[#allocation3 + $0x78] sm:$0xf0] %v480
      %v497 = vld [vmem:[#allocation2] sm:$0xff]
      %v498 = vld [vmem:[#allocation2 + $0x8] sm:$0xff]
      %v499 = vld [vmem:[#allocation2 + $0x10] sm:$0xff]
      %v500 = vld [vmem:[#allocation2 + $0x18] sm:$0xff]
      %v501 = vld [vmem:[#allocation2 + $0x20] sm:$0xf]
      %507 = vst [vmem:[#allocation1] ss:$2 sm:$0xff] %v497
      %s508 = scalar_lea.vmem [#allocation1], 16
      %509 = vst [vmem:[%s508] ss:$2 sm:$0xff] %v498
      %s510 = scalar_lea.vmem [#allocation1], 32
      %511 = vst [vmem:[%s510] ss:$2 sm:$0xff] %v499
      %s512 = scalar_lea.vmem [#allocation1], 48
      %513 = vst [vmem:[%s512] ss:$2 sm:$0xff] %v500
      %v514 = vld.sshfl [vmem:[#allocation1] sm:$0xff pattern:$0x75316420]
      %v515 = vld.sshfl [vmem:[#allocation1 + $0x8] sm:$0xff pattern:$0x75316420]
      %v516 = vld.sshfl [vmem:[#allocation1 + $0x10] sm:$0xff pattern:$0x75316420]
      %v517 = vld.sshfl [vmem:[#allocation1 + $0x18] sm:$0xff pattern:$0x75316420]
      %v518 = vld.sshfl [vmem:[#allocation1 + $0x20] sm:$0xff pattern:$0x75316420]
      %v519 = vld.sshfl [vmem:[#allocation1 + $0x28] sm:$0xff pattern:$0x75316420]
      %v520 = vld.sshfl [vmem:[#allocation1 + $0x30] sm:$0xff pattern:$0x75316420]
      %v521 = vld.sshfl [vmem:[#allocation1 + $0x38] sm:$0xff pattern:$0x75316420]
      %522 = vst [vmem:[#allocation1] ss:$2 sm:$0xff] %v501
      %v523 = vld.sshfl [vmem:[#allocation1] sm:$0xff pattern:$0x75316420]
      %524 = vrot.lane.b32.xlu0 %v514, 117
      %v525 = vpop.permute.xlu0 %524
      %526 = vrot.lane.b32.xlu0 %v515, 117
      %v527 = vpop.permute.xlu0 %526
      %528 = vrot.lane.b32.xlu0 %v516, 117
      %v529 = vpop.permute.xlu0 %528
      %530 = vrot.lane.b32.xlu0 %v517, 117
      %v531 = vpop.permute.xlu0 %530
      %532 = vrot.lane.b32.xlu0 %v518, 117
      %v533 = vpop.permute.xlu0 %532
      %534 = vrot.lane.b32.xlu0 %v519, 117
      %v535 = vpop.permute.xlu0 %534
      %536 = vrot.lane.b32.xlu0 %v520, 117
      %v537 = vpop.permute.xlu0 %536
      %538 = vrot.lane.b32.xlu0 %v521, 117
      %v539 = vpop.permute.xlu0 %538
      %540 = vrot.lane.b32.xlu0 %v523, 117
      %v541 = vpop.permute.xlu0 %540
      %vm542 = vcmask 957440
      %v543 = vsel %vm542, %v525, %v527
      %v544 = vsel %vm542, %v527, %v529
      %v545 = vsel %vm542, %v529, %v531
      %v546 = vsel %vm542, %v531, %v533
      %v547 = vsel %vm542, %v533, %v535
      %v548 = vsel %vm542, %v535, %v537
      %v549 = vsel %vm542, %v537, %v539
      %v550 = vsel %vm542, %v539, %v541
      %559 = vst [vmem:[#allocation3 + $0x80] sm:$0xf] %v543
      %560 = vst [vmem:[#allocation3 + $0x88] sm:$0xf] %v544
      %561 = vst [vmem:[#allocation3 + $0x90] sm:$0xf] %v545
      %562 = vst [vmem:[#allocation3 + $0x98] sm:$0xf] %v546
      %563 = vst [vmem:[#allocation3 + $0xa0] sm:$0xf] %v547
      %564 = vst [vmem:[#allocation3 + $0xa8] sm:$0xf] %v548
      %565 = vst [vmem:[#allocation3 + $0xb0] sm:$0xf] %v549
      %566 = vst [vmem:[#allocation3 + $0xb8] sm:$0xf] %v550
      %v567 = vld [vmem:[#allocation2] sm:$0xff]
      %v568 = vld [vmem:[#allocation2 + $0x8] sm:$0xff]
      %v569 = vld [vmem:[#allocation2 + $0x10] sm:$0xff]
      %v570 = vld [vmem:[#allocation2 + $0x18] sm:$0xff]
      %v571 = vld [vmem:[#allocation2 + $0x20] sm:$0xf]
      %s577 = scalar_lea.vmem [#allocation1], 1
      %578 = vst [vmem:[%s577] ss:$2 sm:$0xff] %v567
      %s579 = scalar_lea.vmem [#allocation1], 17
      %580 = vst [vmem:[%s579] ss:$2 sm:$0xff] %v568
      %s581 = scalar_lea.vmem [#allocation1], 33
      %582 = vst [vmem:[%s581] ss:$2 sm:$0xff] %v569
      %s583 = scalar_lea.vmem [#allocation1], 49
      %584 = vst [vmem:[%s583] ss:$2 sm:$0xff] %v570
      %v585 = vld.sshfl [vmem:[#allocation1] sm:$0xff pattern:$0x75316420]
      %v586 = vld.sshfl [vmem:[#allocation1 + $0x8] sm:$0xff pattern:$0x75316420]
      %v587 = vld.sshfl [vmem:[#allocation1 + $0x10] sm:$0xff pattern:$0x75316420]
      %v588 = vld.sshfl [vmem:[#allocation1 + $0x18] sm:$0xff pattern:$0x75316420]
      %v589 = vld.sshfl [vmem:[#allocation1 + $0x20] sm:$0xff pattern:$0x75316420]
      %v590 = vld.sshfl [vmem:[#allocation1 + $0x28] sm:$0xff pattern:$0x75316420]
      %v591 = vld.sshfl [vmem:[#allocation1 + $0x30] sm:$0xff pattern:$0x75316420]
      %v592 = vld.sshfl [vmem:[#allocation1 + $0x38] sm:$0xff pattern:$0x75316420]
      %593 = vst [vmem:[%s577] ss:$2 sm:$0xff] %v571
      %v594 = vld.sshfl [vmem:[#allocation1] sm:$0xff pattern:$0x75316420]
      %595 = vrot.lane.b32.xlu0 %v585, 116
      %v596 = vpop.permute.xlu0 %595
      %597 = vrot.lane.b32.xlu0 %v586, 116
      %v598 = vpop.permute.xlu0 %597
      %599 = vrot.lane.b32.xlu0 %v587, 116
      %v600 = vpop.permute.xlu0 %599
      %601 = vrot.lane.b32.xlu0 %v588, 116
      %v602 = vpop.permute.xlu0 %601
      %603 = vrot.lane.b32.xlu0 %v589, 116
      %v604 = vpop.permute.xlu0 %603
      %605 = vrot.lane.b32.xlu0 %v590, 116
      %v606 = vpop.permute.xlu0 %605
      %607 = vrot.lane.b32.xlu0 %v591, 116
      %v608 = vpop.permute.xlu0 %607
      %609 = vrot.lane.b32.xlu0 %v592, 116
      %v610 = vpop.permute.xlu0 %609
      %611 = vrot.lane.b32.xlu0 %v594, 116
      %v612 = vpop.permute.xlu0 %611
      %vm613 = vcmask 949248
      %v614 = vsel %vm613, %v596, %v598
      %v615 = vsel %vm613, %v598, %v600
      %v616 = vsel %vm613, %v600, %v602
      %v617 = vsel %vm613, %v602, %v604
      %v618 = vsel %vm613, %v604, %v606
      %v619 = vsel %vm613, %v606, %v608
      %v620 = vsel %vm613, %v608, %v610
      %v621 = vsel %vm613, %v610, %v612
      %630 = vst [vmem:[#allocation3 + $0x80] sm:$0xf0] %v614
      %631 = vst [vmem:[#allocation3 + $0x88] sm:$0xf0] %v615
      %632 = vst [vmem:[#allocation3 + $0x90] sm:$0xf0] %v616
      %633 = vst [vmem:[#allocation3 + $0x98] sm:$0xf0] %v617
      %634 = vst [vmem:[#allocation3 + $0xa0] sm:$0xf0] %v618
      %635 = vst [vmem:[#allocation3 + $0xa8] sm:$0xf0] %v619
      %636 = vst [vmem:[#allocation3 + $0xb0] sm:$0xf0] %v620
      %637 = vst [vmem:[#allocation3 + $0xb8] sm:$0xf0] %v621
      %v638 = vld [vmem:[#allocation2] sm:$0xff]
      %v639 = vld [vmem:[#allocation2 + $0x8] sm:$0xff]
      %v640 = vld [vmem:[#allocation2 + $0x10] sm:$0xff]
      %v641 = vld [vmem:[#allocation2 + $0x18] sm:$0xff]
      %v642 = vld [vmem:[#allocation2 + $0x20] sm:$0xf]
      %648 = vst [vmem:[#allocation1] ss:$2 sm:$0xff] %v638
      %s649 = scalar_lea.vmem [#allocation1], 16
      %650 = vst [vmem:[%s649] ss:$2 sm:$0xff] %v639
      %s651 = scalar_lea.vmem [#allocation1], 32
      %652 = vst [vmem:[%s651] ss:$2 sm:$0xff] %v640
      %s653 = scalar_lea.vmem [#allocation1], 48
      %654 = vst [vmem:[%s653] ss:$2 sm:$0xff] %v641
      %v655 = vld.sshfl [vmem:[#allocation1] sm:$0xff pattern:$0x75316420]
      %v656 = vld.sshfl [vmem:[#allocation1 + $0x8] sm:$0xff pattern:$0x75316420]
      %v657 = vld.sshfl [vmem:[#allocation1 + $0x10] sm:$0xff pattern:$0x75316420]
      %v658 = vld.sshfl [vmem:[#allocation1 + $0x18] sm:$0xff pattern:$0x75316420]
      %v659 = vld.sshfl [vmem:[#allocation1 + $0x20] sm:$0xff pattern:$0x75316420]
      %v660 = vld.sshfl [vmem:[#allocation1 + $0x28] sm:$0xff pattern:$0x75316420]
      %v661 = vld.sshfl [vmem:[#allocation1 + $0x30] sm:$0xff pattern:$0x75316420]
      %v662 = vld.sshfl [vmem:[#allocation1 + $0x38] sm:$0xff pattern:$0x75316420]
      %663 = vst [vmem:[#allocation1] ss:$2 sm:$0xff] %v642
      %v664 = vld.sshfl [vmem:[#allocation1] sm:$0xff pattern:$0x75316420]
      %665 = vrot.lane.b32.xlu0 %v655, 108
      %v666 = vpop.permute.xlu0 %665
      %667 = vrot.lane.b32.xlu0 %v656, 108
      %v668 = vpop.permute.xlu0 %667
      %669 = vrot.lane.b32.xlu0 %v657, 108
      %v670 = vpop.permute.xlu0 %669
      %671 = vrot.lane.b32.xlu0 %v658, 108
      %v672 = vpop.permute.xlu0 %671
      %673 = vrot.lane.b32.xlu0 %v659, 108
      %v674 = vpop.permute.xlu0 %673
      %675 = vrot.lane.b32.xlu0 %v660, 108
      %v676 = vpop.permute.xlu0 %675
      %677 = vrot.lane.b32.xlu0 %v661, 108
      %v678 = vpop.permute.xlu0 %677
      %679 = vrot.lane.b32.xlu0 %v662, 108
      %v680 = vpop.permute.xlu0 %679
      %681 = vrot.lane.b32.xlu0 %v664, 108
      %v682 = vpop.permute.xlu0 %681
      %vm683 = vcmask 883712
      %v684 = vsel %vm683, %v666, %v668
      %v685 = vsel %vm683, %v668, %v670
      %v686 = vsel %vm683, %v670, %v672
      %v687 = vsel %vm683, %v672, %v674
      %v688 = vsel %vm683, %v674, %v676
      %v689 = vsel %vm683, %v676, %v678
      %v690 = vsel %vm683, %v678, %v680
      %v691 = vsel %vm683, %v680, %v682
      %700 = vst [vmem:[#allocation3 + $0xc0] sm:$0xf] %v684
      %701 = vst [vmem:[#allocation3 + $0xc8] sm:$0xf] %v685
      %702 = vst [vmem:[#allocation3 + $0xd0] sm:$0xf] %v686
      %703 = vst [vmem:[#allocation3 + $0xd8] sm:$0xf] %v687
      %704 = vst [vmem:[#allocation3 + $0xe0] sm:$0xf] %v688
      %705 = vst [vmem:[#allocation3 + $0xe8] sm:$0xf] %v689
      %706 = vst [vmem:[#allocation3 + $0xf0] sm:$0xf] %v690
      %707 = vst [vmem:[#allocation3 + $0xf8] sm:$0xf] %v691
      %v708 = vld [vmem:[#allocation2] sm:$0xff]
      %v709 = vld [vmem:[#allocation2 + $0x8] sm:$0xff]
      %v710 = vld [vmem:[#allocation2 + $0x10] sm:$0xff]
      %v711 = vld [vmem:[#allocation2 + $0x18] sm:$0xff]
      %v712 = vld [vmem:[#allocation2 + $0x20] sm:$0xf]
      %s718 = scalar_lea.vmem [#allocation1], 1
      %719 = vst [vmem:[%s718] ss:$2 sm:$0xff] %v708
      %s720 = scalar_lea.vmem [#allocation1], 17
      %721 = vst [vmem:[%s720] ss:$2 sm:$0xff] %v709
      %s722 = scalar_lea.vmem [#allocation1], 33
      %723 = vst [vmem:[%s722] ss:$2 sm:$0xff] %v710
      %s724 = scalar_lea.vmem [#allocation1], 49
      %725 = vst [vmem:[%s724] ss:$2 sm:$0xff] %v711
      %v726 = vld.sshfl [vmem:[#allocation1] sm:$0xff pattern:$0x75316420]
      %v727 = vld.sshfl [vmem:[#allocation1 + $0x8] sm:$0xff pattern:$0x75316420]
      %v728 = vld.sshfl [vmem:[#allocation1 + $0x10] sm:$0xff pattern:$0x75316420]
      %v729 = vld.sshfl [vmem:[#allocation1 + $0x18] sm:$0xff pattern:$0x75316420]
      %v730 = vld.sshfl [vmem:[#allocation1 + $0x20] sm:$0xff pattern:$0x75316420]
      %v731 = vld.sshfl [vmem:[#allocation1 + $0x28] sm:$0xff pattern:$0x75316420]
      %v732 = vld.sshfl [vmem:[#allocation1 + $0x30] sm:$0xff pattern:$0x75316420]
      %v733 = vld.sshfl [vmem:[#allocation1 + $0x38] sm:$0xff pattern:$0x75316420]
      %734 = vst [vmem:[%s718] ss:$2 sm:$0xff] %v712
      %v735 = vld.sshfl [vmem:[#allocation1] sm:$0xff pattern:$0x75316420]
      %736 = vrot.lane.b32.xlu0 %v726, 107
      %v737 = vpop.permute.xlu0 %736
      %738 = vrot.lane.b32.xlu0 %v727, 107
      %v739 = vpop.permute.xlu0 %738
      %740 = vrot.lane.b32.xlu0 %v728, 107
      %v741 = vpop.permute.xlu0 %740
      %742 = vrot.lane.b32.xlu0 %v729, 107
      %v743 = vpop.permute.xlu0 %742
      %744 = vrot.lane.b32.xlu0 %v730, 107
      %v745 = vpop.permute.xlu0 %744
      %746 = vrot.lane.b32.xlu0 %v731, 107
      %v747 = vpop.permute.xlu0 %746
      %748 = vrot.lane.b32.xlu0 %v732, 107
      %v749 = vpop.permute.xlu0 %748
      %750 = vrot.lane.b32.xlu0 %v733, 107
      %v751 = vpop.permute.xlu0 %750
      %752 = vrot.lane.b32.xlu0 %v735, 107
      %v753 = vpop.permute.xlu0 %752
      %vm754 = vcmask 875520
      %v755 = vsel %vm754, %v737, %v739
      %v756 = vsel %vm754, %v739, %v741
      %v757 = vsel %vm754, %v741, %v743
      %v758 = vsel %vm754, %v743, %v745
      %v759 = vsel %vm754, %v745, %v747
      %v760 = vsel %vm754, %v747, %v749
      %v761 = vsel %vm754, %v749, %v751
      %v762 = vsel %vm754, %v751, %v753
      %771 = vst [vmem:[#allocation3 + $0xc0] sm:$0xf0] %v755
      %772 = vst [vmem:[#allocation3 + $0xc8] sm:$0xf0] %v756
      %773 = vst [vmem:[#allocation3 + $0xd0] sm:$0xf0] %v757
      %774 = vst [vmem:[#allocation3 + $0xd8] sm:$0xf0] %v758
      %775 = vst [vmem:[#allocation3 + $0xe0] sm:$0xf0] %v759
      %776 = vst [vmem:[#allocation3 + $0xe8] sm:$0xf0] %v760
      %777 = vst [vmem:[#allocation3 + $0xf0] sm:$0xf0] %v761
      %778 = vst [vmem:[#allocation3 + $0xf8] sm:$0xf0] %v762
      %v779 = vld [vmem:[#allocation2] sm:$0xff]
      %v780 = vld [vmem:[#allocation2 + $0x8] sm:$0xff]
      %v781 = vld [vmem:[#allocation2 + $0x10] sm:$0xff]
      %v782 = vld [vmem:[#allocation2 + $0x18] sm:$0xff]
      %v783 = vld [vmem:[#allocation2 + $0x20] sm:$0xf]
      %789 = vst [vmem:[#allocation1] ss:$2 sm:$0xff] %v779
      %s790 = scalar_lea.vmem [#allocation1], 16
      %791 = vst [vmem:[%s790] ss:$2 sm:$0xff] %v780
      %s792 = scalar_lea.vmem [#allocation1], 32
      %793 = vst [vmem:[%s792] ss:$2 sm:$0xff] %v781
      %s794 = scalar_lea.vmem [#allocation1], 48
      %795 = vst [vmem:[%s794] ss:$2 sm:$0xff] %v782
      %v796 = vld.sshfl [vmem:[#allocation1] sm:$0xff pattern:$0x75316420]
      %v797 = vld.sshfl [vmem:[#allocation1 + $0x8] sm:$0xff pattern:$0x75316420]
      %v798 = vld.sshfl [vmem:[#allocation1 + $0x10] sm:$0xff pattern:$0x75316420]
      %v799 = vld.sshfl [vmem:[#allocation1 + $0x18] sm:$0xff pattern:$0x75316420]
      %v800 = vld.sshfl [vmem:[#allocation1 + $0x20] sm:$0xff pattern:$0x75316420]
      %v801 = vld.sshfl [vmem:[#allocation1 + $0x28] sm:$0xff pattern:$0x75316420]
      %v802 = vld.sshfl [vmem:[#allocation1 + $0x30] sm:$0xff pattern:$0x75316420]
      %v803 = vld.sshfl [vmem:[#allocation1 + $0x38] sm:$0xff pattern:$0x75316420]
      %804 = vst [vmem:[#allocation1] ss:$2 sm:$0xff] %v783
      %v805 = vld.sshfl [vmem:[#allocation1] sm:$0xff pattern:$0x75316420]
      %806 = vrot.lane.b32.xlu0 %v796, 106
      %v807 = vpop.permute.xlu0 %806
      %808 = vrot.lane.b32.xlu0 %v797, 106
      %v809 = vpop.permute.xlu0 %808
      %810 = vrot.lane.b32.xlu0 %v798, 106
      %v811 = vpop.permute.xlu0 %810
      %812 = vrot.lane.b32.xlu0 %v799, 106
      %v813 = vpop.permute.xlu0 %812
      %814 = vrot.lane.b32.xlu0 %v800, 106
      %v815 = vpop.permute.xlu0 %814
      %816 = vrot.lane.b32.xlu0 %v801, 106
      %v817 = vpop.permute.xlu0 %816
      %818 = vrot.lane.b32.xlu0 %v802, 106
      %v819 = vpop.permute.xlu0 %818
      %820 = vrot.lane.b32.xlu0 %v803, 106
      %v821 = vpop.permute.xlu0 %820
      %822 = vrot.lane.b32.xlu0 %v805, 106
      %v823 = vpop.permute.xlu0 %822
      %vm824 = vcmask 867328
      %v825 = vsel %vm824, %v807, %v809
      %v826 = vsel %vm824, %v809, %v811
      %v827 = vsel %vm824, %v811, %v813
      %v828 = vsel %vm824, %v813, %v815
      %v829 = vsel %vm824, %v815, %v817
      %v830 = vsel %vm824, %v817, %v819
      %v831 = vsel %vm824, %v819, %v821
      %v832 = vsel %vm824, %v821, %v823
      %841 = vst [vmem:[#allocation3 + $0x100] sm:$0xf] %v825
      %842 = vst [vmem:[#allocation3 + $0x108] sm:$0xf] %v826
      %843 = vst [vmem:[#allocation3 + $0x110] sm:$0xf] %v827
      %844 = vst [vmem:[#allocation3 + $0x118] sm:$0xf] %v828
      %845 = vst [vmem:[#allocation3 + $0x120] sm:$0xf] %v829
      %846 = vst [vmem:[#allocation3 + $0x128] sm:$0xf] %v830
      %847 = vst [vmem:[#allocation3 + $0x130] sm:$0xf] %v831
      %848 = vst [vmem:[#allocation3 + $0x138] sm:$0xf] %v832
      %v849 = vld [vmem:[#allocation2] sm:$0xff]
      %v850 = vld [vmem:[#allocation2 + $0x8] sm:$0xff]
      %v851 = vld [vmem:[#allocation2 + $0x10] sm:$0xff]
      %v852 = vld [vmem:[#allocation2 + $0x18] sm:$0xff]
      %v853 = vld [vmem:[#allocation2 + $0x20] sm:$0xf]
      %s859 = scalar_lea.vmem [#allocation1], 1
      %860 = vst [vmem:[%s859] ss:$2 sm:$0xff] %v849
      %s861 = scalar_lea.vmem [#allocation1], 17
      %862 = vst [vmem:[%s861] ss:$2 sm:$0xff] %v850
      %s863 = scalar_lea.vmem [#allocation1], 33
      %864 = vst [vmem:[%s863] ss:$2 sm:$0xff] %v851
      %s865 = scalar_lea.vmem [#allocation1], 49
      %866 = vst [vmem:[%s865] ss:$2 sm:$0xff] %v852
      %v867 = vld.sshfl [vmem:[#allocation1] sm:$0xff pattern:$0x75316420]
      %v868 = vld.sshfl [vmem:[#allocation1 + $0x8] sm:$0xff pattern:$0x75316420]
      %v869 = vld.sshfl [vmem:[#allocation1 + $0x10] sm:$0xff pattern:$0x75316420]
      %v870 = vld.sshfl [vmem:[#allocation1 + $0x18] sm:$0xff pattern:$0x75316420]
      %v871 = vld.sshfl [vmem:[#allocation1 + $0x20] sm:$0xff pattern:$0x75316420]
      %v872 = vld.sshfl [vmem:[#allocation1 + $0x28] sm:$0xff pattern:$0x75316420]
      %v873 = vld.sshfl [vmem:[#allocation1 + $0x30] sm:$0xff pattern:$0x75316420]
      %v874 = vld.sshfl [vmem:[#allocation1 + $0x38] sm:$0xff pattern:$0x75316420]
      %875 = vst [vmem:[%s859] ss:$2 sm:$0xff] %v853
      %v876 = vld.sshfl [vmem:[#allocation1] sm:$0xff pattern:$0x75316420]
      %877 = vrot.lane.b32.xlu0 %v867, 28
      %v878 = vpop.permute.xlu0 %877
      %879 = vrot.lane.b32.xlu0 %v868, 28
      %v880 = vpop.permute.xlu0 %879
      %881 = vrot.lane.b32.xlu0 %v869, 28
      %v882 = vpop.permute.xlu0 %881
      %883 = vrot.lane.b32.xlu0 %v870, 28
      %v884 = vpop.permute.xlu0 %883
      %885 = vrot.lane.b32.xlu0 %v871, 28
      %v886 = vpop.permute.xlu0 %885
      %887 = vrot.lane.b32.xlu0 %v872, 28
      %v888 = vpop.permute.xlu0 %887
      %889 = vrot.lane.b32.xlu0 %v873, 28
      %v890 = vpop.permute.xlu0 %889
      %891 = vrot.lane.b32.xlu0 %v874, 28
      %v892 = vpop.permute.xlu0 %891
      %893 = vrot.lane.b32.xlu0 %v876, 28
      %v894 = vpop.permute.xlu0 %893
      %vm895 = vcmask 228352
      %v896 = vsel %vm895, %v878, %v880
      %v897 = vsel %vm895, %v880, %v882
      %v898 = vsel %vm895, %v882, %v884
      %v899 = vsel %vm895, %v884, %v886
      %v900 = vsel %vm895, %v886, %v888
      %v901 = vsel %vm895, %v888, %v890
      %v902 = vsel %vm895, %v890, %v892
      %v903 = vsel %vm895, %v892, %v894
      %912 = vst [vmem:[#allocation3 + $0x100] sm:$0xf0] %v896
      %913 = vst [vmem:[#allocation3 + $0x108] sm:$0xf0] %v897
      %914 = vst [vmem:[#allocation3 + $0x110] sm:$0xf0] %v898
      %915 = vst [vmem:[#allocation3 + $0x118] sm:$0xf0] %v899
      %916 = vst [vmem:[#allocation3 + $0x120] sm:$0xf0] %v900
      %917 = vst [vmem:[#allocation3 + $0x128] sm:$0xf0] %v901
      %918 = vst [vmem:[#allocation3 + $0x130] sm:$0xf0] %v902
      %919 = vst [vmem:[#allocation3 + $0x138] sm:$0xf0] %v903
      %v920 = vld [vmem:[#allocation2] sm:$0xff]
      %v921 = vld [vmem:[#allocation2 + $0x8] sm:$0xff]
      %v922 = vld [vmem:[#allocation2 + $0x10] sm:$0xff]
      %v923 = vld [vmem:[#allocation2 + $0x18] sm:$0xff]
      %v924 = vld [vmem:[#allocation2 + $0x20] sm:$0xf]
      %930 = vst [vmem:[#allocation1] ss:$2 sm:$0xff] %v920
      %s931 = scalar_lea.vmem [#allocation1], 16
      %932 = vst [vmem:[%s931] ss:$2 sm:$0xff] %v921
      %s933 = scalar_lea.vmem [#allocation1], 32
      %934 = vst [vmem:[%s933] ss:$2 sm:$0xff] %v922
      %s935 = scalar_lea.vmem [#allocation1], 48
      %936 = vst [vmem:[%s935] ss:$2 sm:$0xff] %v923
      %v937 = vld.sshfl [vmem:[#allocation1] sm:$0xff pattern:$0x75316420]
      %v938 = vld.sshfl [vmem:[#allocation1 + $0x8] sm:$0xff pattern:$0x75316420]
      %v939 = vld.sshfl [vmem:[#allocation1 + $0x10] sm:$0xff pattern:$0x75316420]
      %v940 = vld.sshfl [vmem:[#allocation1 + $0x18] sm:$0xff pattern:$0x75316420]
      %v941 = vld.sshfl [vmem:[#allocation1 + $0x20] sm:$0xff pattern:$0x75316420]
      %v942 = vld.sshfl [vmem:[#allocation1 + $0x28] sm:$0xff pattern:$0x75316420]
      %v943 = vld.sshfl [vmem:[#allocation1 + $0x30] sm:$0xff pattern:$0x75316420]
      %v944 = vld.sshfl [vmem:[#allocation1 + $0x38] sm:$0xff pattern:$0x75316420]
      %945 = vst [vmem:[#allocation1] ss:$2 sm:$0xff] %v924
      %v946 = vld.sshfl [vmem:[#allocation1] sm:$0xff pattern:$0x75316420]
      %947 = vrot.lane.b32.xlu0 %v937, 27
      %v948 = vpop.permute.xlu0 %947
      %949 = vrot.lane.b32.xlu0 %v938, 27
      %v950 = vpop.permute.xlu0 %949
      %951 = vrot.lane.b32.xlu0 %v939, 27
      %v952 = vpop.permute.xlu0 %951
      %953 = vrot.lane.b32.xlu0 %v940, 27
      %v954 = vpop.permute.xlu0 %953
      %955 = vrot.lane.b32.xlu0 %v941, 27
      %v956 = vpop.permute.xlu0 %955
      %957 = vrot.lane.b32.xlu0 %v942, 27
      %v958 = vpop.permute.xlu0 %957
      %959 = vrot.lane.b32.xlu0 %v943, 27
      %v960 = vpop.permute.xlu0 %959
      %961 = vrot.lane.b32.xlu0 %v944, 27
      %v962 = vpop.permute.xlu0 %961
      %963 = vrot.lane.b32.xlu0 %v946, 27
      %v964 = vpop.permute.xlu0 %963
      %vm965 = vcmask 220160
      %v966 = vsel %vm965, %v948, %v950
      %v967 = vsel %vm965, %v950, %v952
      %v968 = vsel %vm965, %v952, %v954
      %v969 = vsel %vm965, %v954, %v956
      %v970 = vsel %vm965, %v956, %v958
      %v971 = vsel %vm965, %v958, %v960
      %v972 = vsel %vm965, %v960, %v962
      %v973 = vsel %vm965, %v962, %v964
      %982 = vst [vmem:[#allocation3 + $0x140] sm:$0xf] %v966
      %983 = vst [vmem:[#allocation3 + $0x148] sm:$0xf] %v967
      %984 = vst [vmem:[#allocation3 + $0x150] sm:$0xf] %v968
      %985 = vst [vmem:[#allocation3 + $0x158] sm:$0xf] %v969
      %986 = vst [vmem:[#allocation3 + $0x160] sm:$0xf] %v970
      %987 = vst [vmem:[#allocation3 + $0x168] sm:$0xf] %v971
      %988 = vst [vmem:[#allocation3 + $0x170] sm:$0xf] %v972
      %989 = vst [vmem:[#allocation3 + $0x178] sm:$0xf] %v973
      %v990 = vld [vmem:[#allocation2] sm:$0xff]
      %v991 = vld [vmem:[#allocation2 + $0x8] sm:$0xff]
      %v992 = vld [vmem:[#allocation2 + $0x10] sm:$0xff]
      %v993 = vld [vmem:[#allocation2 + $0x18] sm:$0xff]
      %v994 = vld [vmem:[#allocation2 + $0x20] sm:$0xf]
      %s1000 = scalar_lea.vmem [#allocation1], 1
      %1001 = vst [vmem:[%s1000] ss:$2 sm:$0xff] %v990
      %s1002 = scalar_lea.vmem [#allocation1], 17
      %1003 = vst [vmem:[%s1002] ss:$2 sm:$0xff] %v991
      %s1004 = scalar_lea.vmem [#allocation1], 33
      %1005 = vst [vmem:[%s1004] ss:$2 sm:$0xff] %v992
      %s1006 = scalar_lea.vmem [#allocation1], 49
      %1007 = vst [vmem:[%s1006] ss:$2 sm:$0xff] %v993
      %v1008 = vld.sshfl [vmem:[#allocation1] sm:$0xff pattern:$0x75316420]
      %v1009 = vld.sshfl [vmem:[#allocation1 + $0x8] sm:$0xff pattern:$0x75316420]
      %v1010 = vld.sshfl [vmem:[#allocation1 + $0x10] sm:$0xff pattern:$0x75316420]
      %v1011 = vld.sshfl [vmem:[#allocation1 + $0x18] sm:$0xff pattern:$0x75316420]
      %v1012 = vld.sshfl [vmem:[#allocation1 + $0x20] sm:$0xff pattern:$0x75316420]
      %v1013 = vld.sshfl [vmem:[#allocation1 + $0x28] sm:$0xff pattern:$0x75316420]
      %v1014 = vld.sshfl [vmem:[#allocation1 + $0x30] sm:$0xff pattern:$0x75316420]
      %v1015 = vld.sshfl [vmem:[#allocation1 + $0x38] sm:$0xff pattern:$0x75316420]
      %1016 = vst [vmem:[%s1000] ss:$2 sm:$0xff] %v994
      %v1017 = vld.sshfl [vmem:[#allocation1] sm:$0xff pattern:$0x75316420]
      %1018 = vrot.lane.b32.xlu0 %v1008, 26
      %v1019 = vpop.permute.xlu0 %1018
      %1020 = vrot.lane.b32.xlu0 %v1009, 26
      %v1021 = vpop.permute.xlu0 %1020
      %1022 = vrot.lane.b32.xlu0 %v1010, 26
      %v1023 = vpop.permute.xlu0 %1022
      %1024 = vrot.lane.b32.xlu0 %v1011, 26
      %v1025 = vpop.permute.xlu0 %1024
      %1026 = vrot.lane.b32.xlu0 %v1012, 26
      %v1027 = vpop.permute.xlu0 %1026
      %1028 = vrot.lane.b32.xlu0 %v1013, 26
      %v1029 = vpop.permute.xlu0 %1028
      %1030 = vrot.lane.b32.xlu0 %v1014, 26
      %v1031 = vpop.permute.xlu0 %1030
      %1032 = vrot.lane.b32.xlu0 %v1015, 26
      %v1033 = vpop.permute.xlu0 %1032
      %1034 = vrot.lane.b32.xlu0 %v1017, 26
      %v1035 = vpop.permute.xlu0 %1034
      %vm1036 = vcmask 211968
      %v1037 = vsel %vm1036, %v1019, %v1021
      %v1038 = vsel %vm1036, %v1021, %v1023
      %v1039 = vsel %vm1036, %v1023, %v1025
      %v1040 = vsel %vm1036, %v1025, %v1027
      %v1041 = vsel %vm1036, %v1027, %v1029
      %v1042 = vsel %vm1036, %v1029, %v1031
      %v1043 = vsel %vm1036, %v1031, %v1033
      %v1044 = vsel %vm1036, %v1033, %v1035
      %1053 = vst [vmem:[#allocation3 + $0x140] sm:$0xf0] %v1037
      %1054 = vst [vmem:[#allocation3 + $0x148] sm:$0xf0] %v1038
      %1055 = vst [vmem:[#allocation3 + $0x150] sm:$0xf0] %v1039
      %1056 = vst [vmem:[#allocation3 + $0x158] sm:$0xf0] %v1040
      %1057 = vst [vmem:[#allocation3 + $0x160] sm:$0xf0] %v1041
      %1058 = vst [vmem:[#allocation3 + $0x168] sm:$0xf0] %v1042
      %1059 = vst [vmem:[#allocation3 + $0x170] sm:$0xf0] %v1043
      %1060 = vst [vmem:[#allocation3 + $0x178] sm:$0xf0] %v1044
      %v1061 = vld [vmem:[#allocation2] sm:$0xff]
      %v1062 = vld [vmem:[#allocation2 + $0x8] sm:$0xff]
      %v1063 = vld [vmem:[#allocation2 + $0x10] sm:$0xff]
      %v1064 = vld [vmem:[#allocation2 + $0x18] sm:$0xff]
      %v1065 = vld [vmem:[#allocation2 + $0x20] sm:$0xf]
      %1071 = vst [vmem:[#allocation1] ss:$2 sm:$0xff] %v1061
      %s1072 = scalar_lea.vmem [#allocation1], 16
      %1073 = vst [vmem:[%s1072] ss:$2 sm:$0xff] %v1062
      %s1074 = scalar_lea.vmem [#allocation1], 32
      %1075 = vst [vmem:[%s1074] ss:$2 sm:$0xff] %v1063
      %s1076 = scalar_lea.vmem [#allocation1], 48
      %1077 = vst [vmem:[%s1076] ss:$2 sm:$0xff] %v1064
      %v1078 = vld.sshfl [vmem:[#allocation1] sm:$0xff pattern:$0x75316420]
      %v1079 = vld.sshfl [vmem:[#allocation1 + $0x8] sm:$0xff pattern:$0x75316420]
      %v1080 = vld.sshfl [vmem:[#allocation1 + $0x10] sm:$0xff pattern:$0x75316420]
      %v1081 = vld.sshfl [vmem:[#allocation1 + $0x18] sm:$0xff pattern:$0x75316420]
      %v1082 = vld.sshfl [vmem:[#allocation1 + $0x20] sm:$0xff pattern:$0x75316420]
      %v1083 = vld.sshfl [vmem:[#allocation1 + $0x28] sm:$0xff pattern:$0x75316420]
      %v1084 = vld.sshfl [vmem:[#allocation1 + $0x30] sm:$0xff pattern:$0x75316420]
      %v1085 = vld.sshfl [vmem:[#allocation1 + $0x38] sm:$0xff pattern:$0x75316420]
      %1086 = vst [vmem:[#allocation1] ss:$2 sm:$0xff] %v1065
      %v1087 = vld.sshfl [vmem:[#allocation1] sm:$0xff pattern:$0x75316420]
      %1088 = vrot.lane.b32.xlu0 %v1078, 18
      %v1089 = vpop.permute.xlu0 %1088
      %1090 = vrot.lane.b32.xlu0 %v1079, 18
      %v1091 = vpop.permute.xlu0 %1090
      %1092 = vrot.lane.b32.xlu0 %v1080, 18
      %v1093 = vpop.permute.xlu0 %1092
      %1094 = vrot.lane.b32.xlu0 %v1081, 18
      %v1095 = vpop.permute.xlu0 %1094
      %1096 = vrot.lane.b32.xlu0 %v1082, 18
      %v1097 = vpop.permute.xlu0 %1096
      %1098 = vrot.lane.b32.xlu0 %v1083, 18
      %v1099 = vpop.permute.xlu0 %1098
      %1100 = vrot.lane.b32.xlu0 %v1084, 18
      %v1101 = vpop.permute.xlu0 %1100
      %1102 = vrot.lane.b32.xlu0 %v1085, 18
      %v1103 = vpop.permute.xlu0 %1102
      %1104 = vrot.lane.b32.xlu0 %v1087, 18
      %v1105 = vpop.permute.xlu0 %1104
      %vm1106 = vcmask 146432
      %v1107 = vsel %vm1106, %v1089, %v1091
      %v1108 = vsel %vm1106, %v1091, %v1093
      %v1109 = vsel %vm1106, %v1093, %v1095
      %v1110 = vsel %vm1106, %v1095, %v1097
      %v1111 = vsel %vm1106, %v1097, %v1099
      %v1112 = vsel %vm1106, %v1099, %v1101
      %v1113 = vsel %vm1106, %v1101, %v1103
      %v1114 = vsel %vm1106, %v1103, %v1105
      %1123 = vst [vmem:[#allocation3 + $0x180] sm:$0xf] %v1107
      %1124 = vst [vmem:[#allocation3 + $0x188] sm:$0xf] %v1108
      %1125 = vst [vmem:[#allocation3 + $0x190] sm:$0xf] %v1109
      %1126 = vst [vmem:[#allocation3 + $0x198] sm:$0xf] %v1110
      %1127 = vst [vmem:[#allocation3 + $0x1a0] sm:$0xf] %v1111
      %1128 = vst [vmem:[#allocation3 + $0x1a8] sm:$0xf] %v1112
      %1129 = vst [vmem:[#allocation3 + $0x1b0] sm:$0xf] %v1113
      %1130 = vst [vmem:[#allocation3 + $0x1b8] sm:$0xf] %v1114
      %v1131 = vld [vmem:[#allocation2] sm:$0xff]
      %v1132 = vld [vmem:[#allocation2 + $0x8] sm:$0xff]
      %v1133 = vld [vmem:[#allocation2 + $0x10] sm:$0xff]
      %v1134 = vld [vmem:[#allocation2 + $0x18] sm:$0xff]
      %v1135 = vld [vmem:[#allocation2 + $0x20] sm:$0xf]
      %s1141 = scalar_lea.vmem [#allocation1], 1
      %1142 = vst [vmem:[%s1141] ss:$2 sm:$0xff] %v1131
      %s1143 = scalar_lea.vmem [#allocation1], 17
      %1144 = vst [vmem:[%s1143] ss:$2 sm:$0xff] %v1132
      %s1145 = scalar_lea.vmem [#allocation1], 33
      %1146 = vst [vmem:[%s1145] ss:$2 sm:$0xff] %v1133
      %s1147 = scalar_lea.vmem [#allocation1], 49
      %1148 = vst [vmem:[%s1147] ss:$2 sm:$0xff] %v1134
      %v1149 = vld.sshfl [vmem:[#allocation1] sm:$0xff pattern:$0x75316420]
      %v1150 = vld.sshfl [vmem:[#allocation1 + $0x8] sm:$0xff pattern:$0x75316420]
      %v1151 = vld.sshfl [vmem:[#allocation1 + $0x10] sm:$0xff pattern:$0x75316420]
      %v1152 = vld.sshfl [vmem:[#allocation1 + $0x18] sm:$0xff pattern:$0x75316420]
      %v1153 = vld.sshfl [vmem:[#allocation1 + $0x20] sm:$0xff pattern:$0x75316420]
      %v1154 = vld.sshfl [vmem:[#allocation1 + $0x28] sm:$0xff pattern:$0x75316420]
      %v1155 = vld.sshfl [vmem:[#allocation1 + $0x30] sm:$0xff pattern:$0x75316420]
      %v1156 = vld.sshfl [vmem:[#allocation1 + $0x38] sm:$0xff pattern:$0x75316420]
      %1157 = vst [vmem:[%s1141] ss:$2 sm:$0xff] %v1135
      %v1158 = vld.sshfl [vmem:[#allocation1] sm:$0xff pattern:$0x75316420]
      %1159 = vrot.lane.b32.xlu0 %v1149, 17
      %v1160 = vpop.permute.xlu0 %1159
      %1161 = vrot.lane.b32.xlu0 %v1150, 17
      %v1162 = vpop.permute.xlu0 %1161
      %1163 = vrot.lane.b32.xlu0 %v1151, 17
      %v1164 = vpop.permute.xlu0 %1163
      %1165 = vrot.lane.b32.xlu0 %v1152, 17
      %v1166 = vpop.permute.xlu0 %1165
      %1167 = vrot.lane.b32.xlu0 %v1153, 17
      %v1168 = vpop.permute.xlu0 %1167
      %1169 = vrot.lane.b32.xlu0 %v1154, 17
      %v1170 = vpop.permute.xlu0 %1169
      %1171 = vrot.lane.b32.xlu0 %v1155, 17
      %v1172 = vpop.permute.xlu0 %1171
      %1173 = vrot.lane.b32.xlu0 %v1156, 17
      %v1174 = vpop.permute.xlu0 %1173
      %1175 = vrot.lane.b32.xlu0 %v1158, 17
      %v1176 = vpop.permute.xlu0 %1175
      %vm1177 = vcmask 138240
      %v1178 = vsel %vm1177, %v1160, %v1162
      %v1179 = vsel %vm1177, %v1162, %v1164
      %v1180 = vsel %vm1177, %v1164, %v1166
      %v1181 = vsel %vm1177, %v1166, %v1168
      %v1182 = vsel %vm1177, %v1168, %v1170
      %v1183 = vsel %vm1177, %v1170, %v1172
      %v1184 = vsel %vm1177, %v1172, %v1174
      %v1185 = vsel %vm1177, %v1174, %v1176
      %1194 = vst [vmem:[#allocation3 + $0x180] sm:$0xf0] %v1178
      %1195 = vst [vmem:[#allocation3 + $0x188] sm:$0xf0] %v1179
      %1196 = vst [vmem:[#allocation3 + $0x190] sm:$0xf0] %v1180
      %1197 = vst [vmem:[#allocation3 + $0x198] sm:$0xf0] %v1181
      %1198 = vst [vmem:[#allocation3 + $0x1a0] sm:$0xf0] %v1182
      %1199 = vst [vmem:[#allocation3 + $0x1a8] sm:$0xf0] %v1183
      %1200 = vst [vmem:[#allocation3 + $0x1b0] sm:$0xf0] %v1184
      %1201 = vst [vmem:[#allocation3 + $0x1b8] sm:$0xf0] %v1185
      %v1202 = vld [vmem:[#allocation2] sm:$0xff]
      %v1203 = vld [vmem:[#allocation2 + $0x8] sm:$0xff]
      %v1204 = vld [vmem:[#allocation2 + $0x10] sm:$0xff]
      %v1205 = vld [vmem:[#allocation2 + $0x18] sm:$0xff]
      %v1206 = vld [vmem:[#allocation2 + $0x20] sm:$0xf]
      %1212 = vst [vmem:[#allocation1] ss:$2 sm:$0xff] %v1202
      %s1213 = scalar_lea.vmem [#allocation1], 16
      %1214 = vst [vmem:[%s1213] ss:$2 sm:$0xff] %v1203
      %s1215 = scalar_lea.vmem [#allocation1], 32
      %1216 = vst [vmem:[%s1215] ss:$2 sm:$0xff] %v1204
      %s1217 = scalar_lea.vmem [#allocation1], 48
      %1218 = vst [vmem:[%s1217] ss:$2 sm:$0xff] %v1205
      %v1219 = vld.sshfl [vmem:[#allocation1] sm:$0xff pattern:$0x75316420]
      %v1220 = vld.sshfl [vmem:[#allocation1 + $0x8] sm:$0xff pattern:$0x75316420]
      %v1221 = vld.sshfl [vmem:[#allocation1 + $0x10] sm:$0xff pattern:$0x75316420]
      %v1222 = vld.sshfl [vmem:[#allocation1 + $0x18] sm:$0xff pattern:$0x75316420]
      %v1223 = vld.sshfl [vmem:[#allocation1 + $0x20] sm:$0xff pattern:$0x75316420]
      %v1224 = vld.sshfl [vmem:[#allocation1 + $0x28] sm:$0xff pattern:$0x75316420]
      %v1225 = vld.sshfl [vmem:[#allocation1 + $0x30] sm:$0xff pattern:$0x75316420]
      %v1226 = vld.sshfl [vmem:[#allocation1 + $0x38] sm:$0xff pattern:$0x75316420]
      %1227 = vst [vmem:[#allocation1] ss:$2 sm:$0xff] %v1206
      %v1228 = vld.sshfl [vmem:[#allocation1] sm:$0xff pattern:$0x75316420]
      %1229 = vrot.lane.b32.xlu0 %v1219, 16
      %v1230 = vpop.permute.xlu0 %1229
      %1231 = vrot.lane.b32.xlu0 %v1220, 16
      %v1232 = vpop.permute.xlu0 %1231
      %1233 = vrot.lane.b32.xlu0 %v1221, 16
      %v1234 = vpop.permute.xlu0 %1233
      %1235 = vrot.lane.b32.xlu0 %v1222, 16
      %v1236 = vpop.permute.xlu0 %1235
      %1237 = vrot.lane.b32.xlu0 %v1223, 16
      %v1238 = vpop.permute.xlu0 %1237
      %1239 = vrot.lane.b32.xlu0 %v1224, 16
      %v1240 = vpop.permute.xlu0 %1239
      %1241 = vrot.lane.b32.xlu0 %v1225, 16
      %v1242 = vpop.permute.xlu0 %1241
      %1243 = vrot.lane.b32.xlu0 %v1226, 16
      %v1244 = vpop.permute.xlu0 %1243
      %1245 = vrot.lane.b32.xlu0 %v1228, 16
      %v1246 = vpop.permute.xlu0 %1245
      %vm1247 = vcmask 130048
      %v1248 = vsel %vm1247, %v1230, %v1232
      %v1249 = vsel %vm1247, %v1232, %v1234
      %v1250 = vsel %vm1247, %v1234, %v1236
      %v1251 = vsel %vm1247, %v1236, %v1238
      %v1252 = vsel %vm1247, %v1238, %v1240
      %v1253 = vsel %vm1247, %v1240, %v1242
      %v1254 = vsel %vm1247, %v1242, %v1244
      %v1255 = vsel %vm1247, %v1244, %v1246
      %1264 = vst [vmem:[#allocation3 + $0x1c0] sm:$0xf] %v1248
      %1265 = vst [vmem:[#allocation3 + $0x1c8] sm:$0xf] %v1249
      %1266 = vst [vmem:[#allocation3 + $0x1d0] sm:$0xf] %v1250
      %1267 = vst [vmem:[#allocation3 + $0x1d8] sm:$0xf] %v1251
      %1268 = vst [vmem:[#allocation3 + $0x1e0] sm:$0xf] %v1252
      %1269 = vst [vmem:[#allocation3 + $0x1e8] sm:$0xf] %v1253
      %1270 = vst [vmem:[#allocation3 + $0x1f0] sm:$0xf] %v1254
      %1271 = vst [vmem:[#allocation3 + $0x1f8] sm:$0xf] %v1255
      %v1272 = vld [vmem:[#allocation2] sm:$0xff]
      %v1273 = vld [vmem:[#allocation2 + $0x8] sm:$0xff]
      %v1274 = vld [vmem:[#allocation2 + $0x10] sm:$0xff]
      %v1275 = vld [vmem:[#allocation2 + $0x18] sm:$0xff]
      %v1276 = vld [vmem:[#allocation2 + $0x20] sm:$0xf]
      %s1282 = scalar_lea.vmem [#allocation1], 1
      %1283 = vst [vmem:[%s1282] ss:$2 sm:$0xff] %v1272
      %s1284 = scalar_lea.vmem [#allocation1], 17
      %1285 = vst [vmem:[%s1284] ss:$2 sm:$0xff] %v1273
      %s1286 = scalar_lea.vmem [#allocation1], 33
      %1287 = vst [vmem:[%s1286] ss:$2 sm:$0xff] %v1274
      %s1288 = scalar_lea.vmem [#allocation1], 49
      %1289 = vst [vmem:[%s1288] ss:$2 sm:$0xff] %v1275
      %v1290 = vld.sshfl [vmem:[#allocation1] sm:$0xff pattern:$0x75316420]
      %v1291 = vld.sshfl [vmem:[#allocation1 + $0x8] sm:$0xff pattern:$0x75316420]
      %v1292 = vld.sshfl [vmem:[#allocation1 + $0x10] sm:$0xff pattern:$0x75316420]
      %v1293 = vld.sshfl [vmem:[#allocation1 + $0x18] sm:$0xff pattern:$0x75316420]
      %v1294 = vld.sshfl [vmem:[#allocation1 + $0x20] sm:$0xff pattern:$0x75316420]
      %v1295 = vld.sshfl [vmem:[#allocation1 + $0x28] sm:$0xff pattern:$0x75316420]
      %v1296 = vld.sshfl [vmem:[#allocation1 + $0x30] sm:$0xff pattern:$0x75316420]
      %v1297 = vld.sshfl [vmem:[#allocation1 + $0x38] sm:$0xff pattern:$0x75316420]
      %1298 = vst [vmem:[%s1282] ss:$2 sm:$0xff] %v1276
      %v1299 = vld.sshfl [vmem:[#allocation1] sm:$0xff pattern:$0x75316420]
      %1300 = vrot.lane.b32.xlu0 %v1290, 8
      %v1301 = vpop.permute.xlu0 %1300
      %1302 = vrot.lane.b32.xlu0 %v1291, 8
      %v1303 = vpop.permute.xlu0 %1302
      %1304 = vrot.lane.b32.xlu0 %v1292, 8
      %v1305 = vpop.permute.xlu0 %1304
      %1306 = vrot.lane.b32.xlu0 %v1293, 8
      %v1307 = vpop.permute.xlu0 %1306
      %1308 = vrot.lane.b32.xlu0 %v1294, 8
      %v1309 = vpop.permute.xlu0 %1308
      %1310 = vrot.lane.b32.xlu0 %v1295, 8
      %v1311 = vpop.permute.xlu0 %1310
      %1312 = vrot.lane.b32.xlu0 %v1296, 8
      %v1313 = vpop.permute.xlu0 %1312
      %1314 = vrot.lane.b32.xlu0 %v1297, 8
      %v1315 = vpop.permute.xlu0 %1314
      %1316 = vrot.lane.b32.xlu0 %v1299, 8
      %v1317 = vpop.permute.xlu0 %1316
      %vm1318 = vcmask 64512
      %v1319 = vsel %vm1318, %v1301, %v1303
      %v1320 = vsel %vm1318, %v1303, %v1305
      %v1321 = vsel %vm1318, %v1305, %v1307
      %v1322 = vsel %vm1318, %v1307, %v1309
      %v1323 = vsel %vm1318, %v1309, %v1311
      %v1324 = vsel %vm1318, %v1311, %v1313
      %v1325 = vsel %vm1318, %v1313, %v1315
      %v1326 = vsel %vm1318, %v1315, %v1317
      %1335 = vst [vmem:[#allocation3 + $0x1c0] sm:$0xf0] %v1319
      %1336 = vst [vmem:[#allocation3 + $0x1c8] sm:$0xf0] %v1320
      %1337 = vst [vmem:[#allocation3 + $0x1d0] sm:$0xf0] %v1321
      %1338 = vst [vmem:[#allocation3 + $0x1d8] sm:$0xf0] %v1322
      %1339 = vst [vmem:[#allocation3 + $0x1e0] sm:$0xf0] %v1323
      %1340 = vst [vmem:[#allocation3 + $0x1e8] sm:$0xf0] %v1324
      %1341 = vst [vmem:[#allocation3 + $0x1f0] sm:$0xf0] %v1325
      %1342 = vst [vmem:[#allocation3 + $0x1f8] sm:$0xf0] %v1326
      %v1343 = vld [vmem:[#allocation2] sm:$0xff]
      %v1344 = vld [vmem:[#allocation2 + $0x8] sm:$0xff]
      %v1345 = vld [vmem:[#allocation2 + $0x10] sm:$0xff]
      %v1346 = vld [vmem:[#allocation2 + $0x18] sm:$0xff]
      %v1347 = vld [vmem:[#allocation2 + $0x20] sm:$0xf]
      %1353 = vst [vmem:[#allocation1] ss:$2 sm:$0xff] %v1343
      %s1354 = scalar_lea.vmem [#allocation1], 16
      %1355 = vst [vmem:[%s1354] ss:$2 sm:$0xff] %v1344
      %s1356 = scalar_lea.vmem [#allocation1], 32
      %1357 = vst [vmem:[%s1356] ss:$2 sm:$0xff] %v1345
      %s1358 = scalar_lea.vmem [#allocation1], 48
      %1359 = vst [vmem:[%s1358] ss:$2 sm:$0xff] %v1346
      %v1360 = vld.sshfl [vmem:[#allocation1] sm:$0xff pattern:$0x75316420]
      %v1361 = vld.sshfl [vmem:[#allocation1 + $0x8] sm:$0xff pattern:$0x75316420]
      %v1362 = vld.sshfl [vmem:[#allocation1 + $0x10] sm:$0xff pattern:$0x75316420]
      %v1363 = vld.sshfl [vmem:[#allocation1 + $0x18] sm:$0xff pattern:$0x75316420]
      %v1364 = vld.sshfl [vmem:[#allocation1 + $0x20] sm:$0xff pattern:$0x75316420]
      %v1365 = vld.sshfl [vmem:[#allocation1 + $0x28] sm:$0xff pattern:$0x75316420]
      %v1366 = vld.sshfl [vmem:[#allocation1 + $0x30] sm:$0xff pattern:$0x75316420]
      %v1367 = vld.sshfl [vmem:[#allocation1 + $0x38] sm:$0xff pattern:$0x75316420]
      %1368 = vst [vmem:[#allocation1] ss:$2 sm:$0xff] %v1347
      %v1369 = vld.sshfl [vmem:[#allocation1] sm:$0xff pattern:$0x75316420]
      %1370 = vrot.lane.b32.xlu0 %v1360, 7
      %v1371 = vpop.permute.xlu0 %1370
      %1372 = vrot.lane.b32.xlu0 %v1361, 7
      %v1373 = vpop.permute.xlu0 %1372
      %1374 = vrot.lane.b32.xlu0 %v1362, 7
      %v1375 = vpop.permute.xlu0 %1374
      %1376 = vrot.lane.b32.xlu0 %v1363, 7
      %v1377 = vpop.permute.xlu0 %1376
      %1378 = vrot.lane.b32.xlu0 %v1364, 7
      %v1379 = vpop.permute.xlu0 %1378
      %1380 = vrot.lane.b32.xlu0 %v1365, 7
      %v1381 = vpop.permute.xlu0 %1380
      %1382 = vrot.lane.b32.xlu0 %v1366, 7
      %v1383 = vpop.permute.xlu0 %1382
      %1384 = vrot.lane.b32.xlu0 %v1367, 7
      %v1385 = vpop.permute.xlu0 %1384
      %1386 = vrot.lane.b32.xlu0 %v1369, 7
      %v1387 = vpop.permute.xlu0 %1386
      %vm1388 = vcmask 56320
      %v1389 = vsel %vm1388, %v1371, %v1373
      %v1390 = vsel %vm1388, %v1373, %v1375
      %v1391 = vsel %vm1388, %v1375, %v1377
      %v1392 = vsel %vm1388, %v1377, %v1379
      %v1393 = vsel %vm1388, %v1379, %v1381
      %v1394 = vsel %vm1388, %v1381, %v1383
      %v1395 = vsel %vm1388, %v1383, %v1385
      %v1396 = vsel %vm1388, %v1385, %v1387
      %1405 = vst [vmem:[#allocation3 + $0x200] sm:$0xf] %v1389
      %1406 = vst [vmem:[#allocation3 + $0x208] sm:$0xf] %v1390
      %1407 = vst [vmem:[#allocation3 + $0x210] sm:$0xf] %v1391
      %1408 = vst [vmem:[#allocation3 + $0x218] sm:$0xf] %v1392
      %1409 = vst [vmem:[#allocation3 + $0x220] sm:$0xf] %v1393
      %1410 = vst [vmem:[#allocation3 + $0x228] sm:$0xf] %v1394
      %1411 = vst [vmem:[#allocation3 + $0x230] sm:$0xf] %v1395
      %1412 = vst [vmem:[#allocation3 + $0x238] sm:$0xf] %v1396
      %v1413 = vld [vmem:[#allocation2] sm:$0xff]
      %v1414 = vld [vmem:[#allocation2 + $0x8] sm:$0xff]
      %v1415 = vld [vmem:[#allocation2 + $0x10] sm:$0xff]
      %v1416 = vld [vmem:[#allocation2 + $0x18] sm:$0xff]
      %v1417 = vld [vmem:[#allocation2 + $0x20] sm:$0xf]
      %s1423 = scalar_lea.vmem [#allocation1], 1
      %1424 = vst [vmem:[%s1423] ss:$2 sm:$0xff] %v1413
      %s1425 = scalar_lea.vmem [#allocation1], 17
      %1426 = vst [vmem:[%s1425] ss:$2 sm:$0xff] %v1414
      %s1427 = scalar_lea.vmem [#allocation1], 33
      %1428 = vst [vmem:[%s1427] ss:$2 sm:$0xff] %v1415
      %s1429 = scalar_lea.vmem [#allocation1], 49
      %1430 = vst [vmem:[%s1429] ss:$2 sm:$0xff] %v1416
      %v1431 = vld.sshfl [vmem:[#allocation1] sm:$0xff pattern:$0x75316420]
      %v1432 = vld.sshfl [vmem:[#allocation1 + $0x8] sm:$0xff pattern:$0x75316420]
      %v1433 = vld.sshfl [vmem:[#allocation1 + $0x10] sm:$0xff pattern:$0x75316420]
      %v1434 = vld.sshfl [vmem:[#allocation1 + $0x18] sm:$0xff pattern:$0x75316420]
      %v1435 = vld.sshfl [vmem:[#allocation1 + $0x20] sm:$0xff pattern:$0x75316420]
      %v1436 = vld.sshfl [vmem:[#allocation1 + $0x28] sm:$0xff pattern:$0x75316420]
      %v1437 = vld.sshfl [vmem:[#allocation1 + $0x30] sm:$0xff pattern:$0x75316420]
      %v1438 = vld.sshfl [vmem:[#allocation1 + $0x38] sm:$0xff pattern:$0x75316420]
      %1439 = vst [vmem:[%s1423] ss:$2 sm:$0xff] %v1417
      %v1440 = vld.sshfl [vmem:[#allocation1] sm:$0xff pattern:$0x75316420]
      %1441 = vrot.lane.b32.xlu0 %v1431, 6
      %v1442 = vpop.permute.xlu0 %1441
      %1443 = vrot.lane.b32.xlu0 %v1432, 6
      %v1444 = vpop.permute.xlu0 %1443
      %1445 = vrot.lane.b32.xlu0 %v1433, 6
      %v1446 = vpop.permute.xlu0 %1445
      %1447 = vrot.lane.b32.xlu0 %v1434, 6
      %v1448 = vpop.permute.xlu0 %1447
      %1449 = vrot.lane.b32.xlu0 %v1435, 6
      %v1450 = vpop.permute.xlu0 %1449
      %1451 = vrot.lane.b32.xlu0 %v1436, 6
      %v1452 = vpop.permute.xlu0 %1451
      %1453 = vrot.lane.b32.xlu0 %v1437, 6
      %v1454 = vpop.permute.xlu0 %1453
      %1455 = vrot.lane.b32.xlu0 %v1438, 6
      %v1456 = vpop.permute.xlu0 %1455
      %1457 = vrot.lane.b32.xlu0 %v1440, 6
      %v1458 = vpop.permute.xlu0 %1457
      %vm1459 = vcmask 48128
      %v1460 = vsel %vm1459, %v1442, %v1444
      %v1461 = vsel %vm1459, %v1444, %v1446
      %v1462 = vsel %vm1459, %v1446, %v1448
      %v1463 = vsel %vm1459, %v1448, %v1450
      %v1464 = vsel %vm1459, %v1450, %v1452
      %v1465 = vsel %vm1459, %v1452, %v1454
      %v1466 = vsel %vm1459, %v1454, %v1456
      %v1467 = vsel %vm1459, %v1456, %v1458
      %1476 = vst [vmem:[#allocation3 + $0x200] sm:$0xf0] %v1460
      %1477 = vst [vmem:[#allocation3 + $0x208] sm:$0xf0] %v1461
      %1478 = vst [vmem:[#allocation3 + $0x210] sm:$0xf0] %v1462
      %1479 = vst [vmem:[#allocation3 + $0x218] sm:$0xf0] %v1463
      %1480 = vst [vmem:[#allocation3 + $0x220] sm:$0xf0] %v1464
      %1481 = vst [vmem:[#allocation3 + $0x228] sm:$0xf0] %v1465
      %1482 = vst [vmem:[#allocation3 + $0x230] sm:$0xf0] %v1466
      %1483 = vst [vmem:[#allocation3 + $0x238] sm:$0xf0] %v1467
      %v1484 = vld [vmem:[#allocation2 + $0x4] sm:$0xff]
      %v1485 = vld [vmem:[#allocation2 + $0xc] sm:$0xff]
      %v1486 = vld [vmem:[#allocation2 + $0x14] sm:$0xff]
      %v1487 = vld [vmem:[#allocation2 + $0x1c] sm:$0xff]
      %v1488 = vld [vmem:[#allocation2 + $0x24] sm:$0xf]
      %1494 = vst [vmem:[#allocation1] ss:$2 sm:$0xff] %v1484
      %s1495 = scalar_lea.vmem [#allocation1], 16
      %1496 = vst [vmem:[%s1495] ss:$2 sm:$0xff] %v1485
      %s1497 = scalar_lea.vmem [#allocation1], 32
      %1498 = vst [vmem:[%s1497] ss:$2 sm:$0xff] %v1486
      %s1499 = scalar_lea.vmem [#allocation1], 48
      %1500 = vst [vmem:[%s1499] ss:$2 sm:$0xff] %v1487
      %v1501 = vld.sshfl [vmem:[#allocation1] sm:$0xff pattern:$0x75316420]
      %v1502 = vld.sshfl [vmem:[#allocation1 + $0x8] sm:$0xff pattern:$0x75316420]
      %v1503 = vld.sshfl [vmem:[#allocation1 + $0x10] sm:$0xff pattern:$0x75316420]
      %v1504 = vld.sshfl [vmem:[#allocation1 + $0x18] sm:$0xff pattern:$0x75316420]
      %v1505 = vld.sshfl [vmem:[#allocation1 + $0x20] sm:$0xff pattern:$0x75316420]
      %v1506 = vld.sshfl [vmem:[#allocation1 + $0x28] sm:$0xff pattern:$0x75316420]
      %v1507 = vld.sshfl [vmem:[#allocation1 + $0x30] sm:$0xff pattern:$0x75316420]
      %v1508 = vld.sshfl [vmem:[#allocation1 + $0x38] sm:$0xff pattern:$0x75316420]
      %1509 = vst [vmem:[#allocation1] ss:$2 sm:$0xff] %v1488
      %v1510 = vld.sshfl [vmem:[#allocation1] sm:$0xff pattern:$0x75316420]
      %1511 = vrot.lane.b32.xlu0 %v1501, 56
      %v1512 = vpop.permute.xlu0 %1511
      %1513 = vrot.lane.b32.xlu0 %v1502, 56
      %v1514 = vpop.permute.xlu0 %1513
      %1515 = vrot.lane.b32.xlu0 %v1503, 56
      %v1516 = vpop.permute.xlu0 %1515
      %1517 = vrot.lane.b32.xlu0 %v1504, 56
      %v1518 = vpop.permute.xlu0 %1517
      %1519 = vrot.lane.b32.xlu0 %v1505, 56
      %v1520 = vpop.permute.xlu0 %1519
      %1521 = vrot.lane.b32.xlu0 %v1506, 56
      %v1522 = vpop.permute.xlu0 %1521
      %1523 = vrot.lane.b32.xlu0 %v1507, 56
      %v1524 = vpop.permute.xlu0 %1523
      %1525 = vrot.lane.b32.xlu0 %v1508, 56
      %v1526 = vpop.permute.xlu0 %1525
      %1527 = vrot.lane.b32.xlu0 %v1510, 56
      %v1528 = vpop.permute.xlu0 %1527
      %vm1529 = vcmask 457728
      %v1530 = vsel %vm1529, %v1512, %v1514
      %v1531 = vsel %vm1529, %v1514, %v1516
      %v1532 = vsel %vm1529, %v1516, %v1518
      %v1533 = vsel %vm1529, %v1518, %v1520
      %v1534 = vsel %vm1529, %v1520, %v1522
      %v1535 = vsel %vm1529, %v1522, %v1524
      %v1536 = vsel %vm1529, %v1524, %v1526
      %v1537 = vsel %vm1529, %v1526, %v1528
      %1546 = vst [vmem:[#allocation3 + $0x240] sm:$0xf] %v1530
      %1547 = vst [vmem:[#allocation3 + $0x248] sm:$0xf] %v1531
      %1548 = vst [vmem:[#allocation3 + $0x250] sm:$0xf] %v1532
      %1549 = vst [vmem:[#allocation3 + $0x258] sm:$0xf] %v1533
      %1550 = vst [vmem:[#allocation3 + $0x260] sm:$0xf] %v1534
      %1551 = vst [vmem:[#allocation3 + $0x268] sm:$0xf] %v1535
      %1552 = vst [vmem:[#allocation3 + $0x270] sm:$0xf] %v1536
      %1553 = vst [vmem:[#allocation3 + $0x278] sm:$0xf] %v1537
      %v1554 = vld [vmem:[#allocation2 + $0x4] sm:$0xff]
      %v1555 = vld [vmem:[#allocation2 + $0xc] sm:$0xff]
      %v1556 = vld [vmem:[#allocation2 + $0x14] sm:$0xff]
      %v1557 = vld [vmem:[#allocation2 + $0x1c] sm:$0xff]
      %v1558 = vld [vmem:[#allocation2 + $0x24] sm:$0xf]
      %s1564 = scalar_lea.vmem [#allocation1], 1
      %1565 = vst [vmem:[%s1564] ss:$2 sm:$0xff] %v1554
      %s1566 = scalar_lea.vmem [#allocation1], 17
      %1567 = vst [vmem:[%s1566] ss:$2 sm:$0xff] %v1555
      %s1568 = scalar_lea.vmem [#allocation1], 33
      %1569 = vst [vmem:[%s1568] ss:$2 sm:$0xff] %v1556
      %s1570 = scalar_lea.vmem [#allocation1], 49
      %1571 = vst [vmem:[%s1570] ss:$2 sm:$0xff] %v1557
      %v1572 = vld.sshfl [vmem:[#allocation1] sm:$0xff pattern:$0x75316420]
      %v1573 = vld.sshfl [vmem:[#allocation1 + $0x8] sm:$0xff pattern:$0x75316420]
      %v1574 = vld.sshfl [vmem:[#allocation1 + $0x10] sm:$0xff pattern:$0x75316420]
      %v1575 = vld.sshfl [vmem:[#allocation1 + $0x18] sm:$0xff pattern:$0x75316420]
      %v1576 = vld.sshfl [vmem:[#allocation1 + $0x20] sm:$0xff pattern:$0x75316420]
      %v1577 = vld.sshfl [vmem:[#allocation1 + $0x28] sm:$0xff pattern:$0x75316420]
      %v1578 = vld.sshfl [vmem:[#allocation1 + $0x30] sm:$0xff pattern:$0x75316420]
      %v1579 = vld.sshfl [vmem:[#allocation1 + $0x38] sm:$0xff pattern:$0x75316420]
      %1580 = vst [vmem:[%s1564] ss:$2 sm:$0xff] %v1558
      %v1581 = vld.sshfl [vmem:[#allocation1] sm:$0xff pattern:$0x75316420]
      %1582 = vrot.lane.b32.xlu0 %v1572, 55
      %v1583 = vpop.permute.xlu0 %1582
      %1584 = vrot.lane.b32.xlu0 %v1573, 55
      %v1585 = vpop.permute.xlu0 %1584
      %1586 = vrot.lane.b32.xlu0 %v1574, 55
      %v1587 = vpop.permute.xlu0 %1586
      %1588 = vrot.lane.b32.xlu0 %v1575, 55
      %v1589 = vpop.permute.xlu0 %1588
      %1590 = vrot.lane.b32.xlu0 %v1576, 55
      %v1591 = vpop.permute.xlu0 %1590
      %1592 = vrot.lane.b32.xlu0 %v1577, 55
      %v1593 = vpop.permute.xlu0 %1592
      %1594 = vrot.lane.b32.xlu0 %v1578, 55
      %v1595 = vpop.permute.xlu0 %1594
      %1596 = vrot.lane.b32.xlu0 %v1579, 55
      %v1597 = vpop.permute.xlu0 %1596
      %1598 = vrot.lane.b32.xlu0 %v1581, 55
      %v1599 = vpop.permute.xlu0 %1598
      %vm1600 = vcmask 449536
      %v1601 = vsel %vm1600, %v1583, %v1585
      %v1602 = vsel %vm1600, %v1585, %v1587
      %v1603 = vsel %vm1600, %v1587, %v1589
      %v1604 = vsel %vm1600, %v1589, %v1591
      %v1605 = vsel %vm1600, %v1591, %v1593
      %v1606 = vsel %vm1600, %v1593, %v1595
      %v1607 = vsel %vm1600, %v1595, %v1597
      %v1608 = vsel %vm1600, %v1597, %v1599
      %1617 = vst [vmem:[#allocation3 + $0x240] sm:$0xf0] %v1601
      %1618 = vst [vmem:[#allocation3 + $0x248] sm:$0xf0] %v1602
      %1619 = vst [vmem:[#allocation3 + $0x250] sm:$0xf0] %v1603
      %1620 = vst [vmem:[#allocation3 + $0x258] sm:$0xf0] %v1604
      %1621 = vst [vmem:[#allocation3 + $0x260] sm:$0xf0] %v1605
      %1622 = vst [vmem:[#allocation3 + $0x268] sm:$0xf0] %v1606
      %1623 = vst [vmem:[#allocation3 + $0x270] sm:$0xf0] %v1607
      %1624 = vst [vmem:[#allocation3 + $0x278] sm:$0xf0] %v1608
      %v1625 = vld [vmem:[#allocation2 + $0x4] sm:$0xff]
      %v1626 = vld [vmem:[#allocation2 + $0xc] sm:$0xff]
      %v1627 = vld [vmem:[#allocation2 + $0x14] sm:$0xff]
      %v1628 = vld [vmem:[#allocation2 + $0x1c] sm:$0xff]
      %v1629 = vld [vmem:[#allocation2 + $0x24] sm:$0xf]
      %1635 = vst [vmem:[#allocation1] ss:$2 sm:$0xff] %v1625
      %s1636 = scalar_lea.vmem [#allocation1], 16
      %1637 = vst [vmem:[%s1636] ss:$2 sm:$0xff] %v1626
      %s1638 = scalar_lea.vmem [#allocation1], 32
      %1639 = vst [vmem:[%s1638] ss:$2 sm:$0xff] %v1627
      %s1640 = scalar_lea.vmem [#allocation1], 48
      %1641 = vst [vmem:[%s1640] ss:$2 sm:$0xff] %v1628
      %v1642 = vld.sshfl [vmem:[#allocation1] sm:$0xff pattern:$0x75316420]
      %v1643 = vld.sshfl [vmem:[#allocation1 + $0x8] sm:$0xff pattern:$0x75316420]
      %v1644 = vld.sshfl [vmem:[#allocation1 + $0x10] sm:$0xff pattern:$0x75316420]
      %v1645 = vld.sshfl [vmem:[#allocation1 + $0x18] sm:$0xff pattern:$0x75316420]
      %v1646 = vld.sshfl [vmem:[#allocation1 + $0x20] sm:$0xff pattern:$0x75316420]
      %v1647 = vld.sshfl [vmem:[#allocation1 + $0x28] sm:$0xff pattern:$0x75316420]
      %v1648 = vld.sshfl [vmem:[#allocation1 + $0x30] sm:$0xff pattern:$0x75316420]
      %v1649 = vld.sshfl [vmem:[#allocation1 + $0x38] sm:$0xff pattern:$0x75316420]
      %1650 = vst [vmem:[#allocation1] ss:$2 sm:$0xff] %v1629
      %v1651 = vld.sshfl [vmem:[#allocation1] sm:$0xff pattern:$0x75316420]
      %1652 = vrot.lane.b32.xlu0 %v1642, 54
      %v1653 = vpop.permute.xlu0 %1652
      %1654 = vrot.lane.b32.xlu0 %v1643, 54
      %v1655 = vpop.permute.xlu0 %1654
      %1656 = vrot.lane.b32.xlu0 %v1644, 54
      %v1657 = vpop.permute.xlu0 %1656
      %1658 = vrot.lane.b32.xlu0 %v1645, 54
      %v1659 = vpop.permute.xlu0 %1658
      %1660 = vrot.lane.b32.xlu0 %v1646, 54
      %v1661 = vpop.permute.xlu0 %1660
      %1662 = vrot.lane.b32.xlu0 %v1647, 54
      %v1663 = vpop.permute.xlu0 %1662
      %1664 = vrot.lane.b32.xlu0 %v1648, 54
      %v1665 = vpop.permute.xlu0 %1664
      %1666 = vrot.lane.b32.xlu0 %v1649, 54
      %v1667 = vpop.permute.xlu0 %1666
      %1668 = vrot.lane.b32.xlu0 %v1651, 54
      %v1669 = vpop.permute.xlu0 %1668
      %vm1670 = vcmask 441344
      %v1671 = vsel %vm1670, %v1653, %v1655
      %v1672 = vsel %vm1670, %v1655, %v1657
      %v1673 = vsel %vm1670, %v1657, %v1659
      %v1674 = vsel %vm1670, %v1659, %v1661
      %v1675 = vsel %vm1670, %v1661, %v1663
      %v1676 = vsel %vm1670, %v1663, %v1665
      %v1677 = vsel %vm1670, %v1665, %v1667
      %v1678 = vsel %vm1670, %v1667, %v1669
      %1687 = vst [vmem:[#allocation3 + $0x280] sm:$0xf] %v1671
      %1688 = vst [vmem:[#allocation3 + $0x288] sm:$0xf] %v1672
      %1689 = vst [vmem:[#allocation3 + $0x290] sm:$0xf] %v1673
      %1690 = vst [vmem:[#allocation3 + $0x298] sm:$0xf] %v1674
      %1691 = vst [vmem:[#allocation3 + $0x2a0] sm:$0xf] %v1675
      %1692 = vst [vmem:[#allocation3 + $0x2a8] sm:$0xf] %v1676
      %1693 = vst [vmem:[#allocation3 + $0x2b0] sm:$0xf] %v1677
      %1694 = vst [vmem:[#allocation3 + $0x2b8] sm:$0xf] %v1678
      %v1695 = vld [vmem:[#allocation2 + $0x4] sm:$0xff]
      %v1696 = vld [vmem:[#allocation2 + $0xc] sm:$0xff]
      %v1697 = vld [vmem:[#allocation2 + $0x14] sm:$0xff]
      %v1698 = vld [vmem:[#allocation2 + $0x1c] sm:$0xff]
      %v1699 = vld [vmem:[#allocation2 + $0x24] sm:$0xf]
      %s1705 = scalar_lea.vmem [#allocation1], 1
      %1706 = vst [vmem:[%s1705] ss:$2 sm:$0xff] %v1695
      %s1707 = scalar_lea.vmem [#allocation1], 17
      %1708 = vst [vmem:[%s1707] ss:$2 sm:$0xff] %v1696
      %s1709 = scalar_lea.vmem [#allocation1], 33
      %1710 = vst [vmem:[%s1709] ss:$2 sm:$0xff] %v1697
      %s1711 = scalar_lea.vmem [#allocation1], 49
      %1712 = vst [vmem:[%s1711] ss:$2 sm:$0xff] %v1698
      %v1713 = vld.sshfl [vmem:[#allocation1] sm:$0xff pattern:$0x75316420]
      %v1714 = vld.sshfl [vmem:[#allocation1 + $0x8] sm:$0xff pattern:$0x75316420]
      %v1715 = vld.sshfl [vmem:[#allocation1 + $0x10] sm:$0xff pattern:$0x75316420]
      %v1716 = vld.sshfl [vmem:[#allocation1 + $0x18] sm:$0xff pattern:$0x75316420]
      %v1717 = vld.sshfl [vmem:[#allocation1 + $0x20] sm:$0xff pattern:$0x75316420]
      %v1718 = vld.sshfl [vmem:[#allocation1 + $0x28] sm:$0xff pattern:$0x75316420]
      %v1719 = vld.sshfl [vmem:[#allocation1 + $0x30] sm:$0xff pattern:$0x75316420]
      %v1720 = vld.sshfl [vmem:[#allocation1 + $0x38] sm:$0xff pattern:$0x75316420]
      %1721 = vst [vmem:[%s1705] ss:$2 sm:$0xff] %v1699
      %v1722 = vld.sshfl [vmem:[#allocation1] sm:$0xff pattern:$0x75316420]
      %1723 = vrot.lane.b32.xlu0 %v1713, 46
      %v1724 = vpop.permute.xlu0 %1723
      %1725 = vrot.lane.b32.xlu0 %v1714, 46
      %v1726 = vpop.permute.xlu0 %1725
      %1727 = vrot.lane.b32.xlu0 %v1715, 46
      %v1728 = vpop.permute.xlu0 %1727
      %1729 = vrot.lane.b32.xlu0 %v1716, 46
      %v1730 = vpop.permute.xlu0 %1729
      %1731 = vrot.lane.b32.xlu0 %v1717, 46
      %v1732 = vpop.permute.xlu0 %1731
      %1733 = vrot.lane.b32.xlu0 %v1718, 46
      %v1734 = vpop.permute.xlu0 %1733
      %1735 = vrot.lane.b32.xlu0 %v1719, 46
      %v1736 = vpop.permute.xlu0 %1735
      %1737 = vrot.lane.b32.xlu0 %v1720, 46
      %v1738 = vpop.permute.xlu0 %1737
      %1739 = vrot.lane.b32.xlu0 %v1722, 46
      %v1740 = vpop.permute.xlu0 %1739
      %vm1741 = vcmask 375808
      %v1742 = vsel %vm1741, %v1724, %v1726
      %v1743 = vsel %vm1741, %v1726, %v1728
      %v1744 = vsel %vm1741, %v1728, %v1730
      %v1745 = vsel %vm1741, %v1730, %v1732
      %v1746 = vsel %vm1741, %v1732, %v1734
      %v1747 = vsel %vm1741, %v1734, %v1736
      %v1748 = vsel %vm1741, %v1736, %v1738
      %v1749 = vsel %vm1741, %v1738, %v1740
      %1758 = vst [vmem:[#allocation3 + $0x280] sm:$0xf0] %v1742
      %1759 = vst [vmem:[#allocation3 + $0x288] sm:$0xf0] %v1743
      %1760 = vst [vmem:[#allocation3 + $0x290] sm:$0xf0] %v1744
      %1761 = vst [vmem:[#allocation3 + $0x298] sm:$0xf0] %v1745
      %1762 = vst [vmem:[#allocation3 + $0x2a0] sm:$0xf0] %v1746
      %1763 = vst [vmem:[#allocation3 + $0x2a8] sm:$0xf0] %v1747
      %1764 = vst [vmem:[#allocation3 + $0x2b0] sm:$0xf0] %v1748
      %1765 = vst [vmem:[#allocation3 + $0x2b8] sm:$0xf0] %v1749
      %v1766 = vld [vmem:[#allocation2 + $0x4] sm:$0xff]
      %v1767 = vld [vmem:[#allocation2 + $0xc] sm:$0xff]
      %v1768 = vld [vmem:[#allocation2 + $0x14] sm:$0xff]
      %v1769 = vld [vmem:[#allocation2 + $0x1c] sm:$0xff]
      %v1770 = vld [vmem:[#allocation2 + $0x24] sm:$0xf]
      %1776 = vst [vmem:[#allocation1] ss:$2 sm:$0xff] %v1766
      %s1777 = scalar_lea.vmem [#allocation1], 16
      %1778 = vst [vmem:[%s1777] ss:$2 sm:$0xff] %v1767
      %s1779 = scalar_lea.vmem [#allocation1], 32
      %1780 = vst [vmem:[%s1779] ss:$2 sm:$0xff] %v1768
      %s1781 = scalar_lea.vmem [#allocation1], 48
      %1782 = vst [vmem:[%s1781] ss:$2 sm:$0xff] %v1769
      %v1783 = vld.sshfl [vmem:[#allocation1] sm:$0xff pattern:$0x75316420]
      %v1784 = vld.sshfl [vmem:[#allocation1 + $0x8] sm:$0xff pattern:$0x75316420]
      %v1785 = vld.sshfl [vmem:[#allocation1 + $0x10] sm:$0xff pattern:$0x75316420]
      %v1786 = vld.sshfl [vmem:[#allocation1 + $0x18] sm:$0xff pattern:$0x75316420]
      %v1787 = vld.sshfl [vmem:[#allocation1 + $0x20] sm:$0xff pattern:$0x75316420]
      %v1788 = vld.sshfl [vmem:[#allocation1 + $0x28] sm:$0xff pattern:$0x75316420]
      %v1789 = vld.sshfl [vmem:[#allocation1 + $0x30] sm:$0xff pattern:$0x75316420]
      %v1790 = vld.sshfl [vmem:[#allocation1 + $0x38] sm:$0xff pattern:$0x75316420]
      %1791 = vst [vmem:[#allocation1] ss:$2 sm:$0xff] %v1770
      %v1792 = vld.sshfl [vmem:[#allocation1] sm:$0xff pattern:$0x75316420]
      %1793 = vrot.lane.b32.xlu0 %v1783, 45
      %v1794 = vpop.permute.xlu0 %1793
      %1795 = vrot.lane.b32.xlu0 %v1784, 45
      %v1796 = vpop.permute.xlu0 %1795
      %1797 = vrot.lane.b32.xlu0 %v1785, 45
      %v1798 = vpop.permute.xlu0 %1797
      %1799 = vrot.lane.b32.xlu0 %v1786, 45
      %v1800 = vpop.permute.xlu0 %1799
      %1801 = vrot.lane.b32.xlu0 %v1787, 45
      %v1802 = vpop.permute.xlu0 %1801
      %1803 = vrot.lane.b32.xlu0 %v1788, 45
      %v1804 = vpop.permute.xlu0 %1803
      %1805 = vrot.lane.b32.xlu0 %v1789, 45
      %v1806 = vpop.permute.xlu0 %1805
      %1807 = vrot.lane.b32.xlu0 %v1790, 45
      %v1808 = vpop.permute.xlu0 %1807
      %1809 = vrot.lane.b32.xlu0 %v1792, 45
      %v1810 = vpop.permute.xlu0 %1809
      %vm1811 = vcmask 367616
      %v1812 = vsel %vm1811, %v1794, %v1796
      %v1813 = vsel %vm1811, %v1796, %v1798
      %v1814 = vsel %vm1811, %v1798, %v1800
      %v1815 = vsel %vm1811, %v1800, %v1802
      %v1816 = vsel %vm1811, %v1802, %v1804
      %v1817 = vsel %vm1811, %v1804, %v1806
      %v1818 = vsel %vm1811, %v1806, %v1808
      %v1819 = vsel %vm1811, %v1808, %v1810
      %1828 = vst [vmem:[#allocation3 + $0x2c0] sm:$0xf] %v1812
      %1829 = vst [vmem:[#allocation3 + $0x2c8] sm:$0xf] %v1813
      %1830 = vst [vmem:[#allocation3 + $0x2d0] sm:$0xf] %v1814
      %1831 = vst [vmem:[#allocation3 + $0x2d8] sm:$0xf] %v1815
      %1832 = vst [vmem:[#allocation3 + $0x2e0] sm:$0xf] %v1816
      %1833 = vst [vmem:[#allocation3 + $0x2e8] sm:$0xf] %v1817
      %1834 = vst [vmem:[#allocation3 + $0x2f0] sm:$0xf] %v1818
      %1835 = vst [vmem:[#allocation3 + $0x2f8] sm:$0xf] %v1819
      %v1836 = vld [vmem:[#allocation2 + $0x4] sm:$0xff]
      %v1837 = vld [vmem:[#allocation2 + $0xc] sm:$0xff]
      %v1838 = vld [vmem:[#allocation2 + $0x14] sm:$0xff]
      %v1839 = vld [vmem:[#allocation2 + $0x1c] sm:$0xff]
      %v1840 = vld [vmem:[#allocation2 + $0x24] sm:$0xf]
      %s1846 = scalar_lea.vmem [#allocation1], 1
      %1847 = vst [vmem:[%s1846] ss:$2 sm:$0xff] %v1836
      %s1848 = scalar_lea.vmem [#allocation1], 17
      %1849 = vst [vmem:[%s1848] ss:$2 sm:$0xff] %v1837
      %s1850 = scalar_lea.vmem [#allocation1], 33
      %1851 = vst [vmem:[%s1850] ss:$2 sm:$0xff] %v1838
      %s1852 = scalar_lea.vmem [#allocation1], 49
      %1853 = vst [vmem:[%s1852] ss:$2 sm:$0xff] %v1839
      %v1854 = vld.sshfl [vmem:[#allocation1] sm:$0xff pattern:$0x75316420]
      %v1855 = vld.sshfl [vmem:[#allocation1 + $0x8] sm:$0xff pattern:$0x75316420]
      %v1856 = vld.sshfl [vmem:[#allocation1 + $0x10] sm:$0xff pattern:$0x75316420]
      %v1857 = vld.sshfl [vmem:[#allocation1 + $0x18] sm:$0xff pattern:$0x75316420]
      %v1858 = vld.sshfl [vmem:[#allocation1 + $0x20] sm:$0xff pattern:$0x75316420]
      %v1859 = vld.sshfl [vmem:[#allocation1 + $0x28] sm:$0xff pattern:$0x75316420]
      %v1860 = vld.sshfl [vmem:[#allocation1 + $0x30] sm:$0xff pattern:$0x75316420]
      %v1861 = vld.sshfl [vmem:[#allocation1 + $0x38] sm:$0xff pattern:$0x75316420]
      %1862 = vst [vmem:[%s1846] ss:$2 sm:$0xff] %v1840
      %v1863 = vld.sshfl [vmem:[#allocation1] sm:$0xff pattern:$0x75316420]
      %1864 = vrot.lane.b32.xlu0 %v1854, 44
      %v1865 = vpop.permute.xlu0 %1864
      %1866 = vrot.lane.b32.xlu0 %v1855, 44
      %v1867 = vpop.permute.xlu0 %1866
      %1868 = vrot.lane.b32.xlu0 %v1856, 44
      %v1869 = vpop.permute.xlu0 %1868
      %1870 = vrot.lane.b32.xlu0 %v1857, 44
      %v1871 = vpop.permute.xlu0 %1870
      %1872 = vrot.lane.b32.xlu0 %v1858, 44
      %v1873 = vpop.permute.xlu0 %1872
      %1874 = vrot.lane.b32.xlu0 %v1859, 44
      %v1875 = vpop.permute.xlu0 %1874
      %1876 = vrot.lane.b32.xlu0 %v1860, 44
      %v1877 = vpop.permute.xlu0 %1876
      %1878 = vrot.lane.b32.xlu0 %v1861, 44
      %v1879 = vpop.permute.xlu0 %1878
      %1880 = vrot.lane.b32.xlu0 %v1863, 44
      %v1881 = vpop.permute.xlu0 %1880
      %vm1882 = vcmask 359424
      %v1883 = vsel %vm1882, %v1865, %v1867
      %v1884 = vsel %vm1882, %v1867, %v1869
      %v1885 = vsel %vm1882, %v1869, %v1871
      %v1886 = vsel %vm1882, %v1871, %v1873
      %v1887 = vsel %vm1882, %v1873, %v1875
      %v1888 = vsel %vm1882, %v1875, %v1877
      %v1889 = vsel %vm1882, %v1877, %v1879
      %v1890 = vsel %vm1882, %v1879, %v1881
      %1899 = vst [vmem:[#allocation3 + $0x2c0] sm:$0xf0] %v1883
      %1900 = vst [vmem:[#allocation3 + $0x2c8] sm:$0xf0] %v1884
      %1901 = vst [vmem:[#allocation3 + $0x2d0] sm:$0xf0] %v1885
      %1902 = vst [vmem:[#allocation3 + $0x2d8] sm:$0xf0] %v1886
      %1903 = vst [vmem:[#allocation3 + $0x2e0] sm:$0xf0] %v1887
      %1904 = vst [vmem:[#allocation3 + $0x2e8] sm:$0xf0] %v1888
      %1905 = vst [vmem:[#allocation3 + $0x2f0] sm:$0xf0] %v1889
      %1906 = vst [vmem:[#allocation3 + $0x2f8] sm:$0xf0] %v1890
      %v1907 = vld [vmem:[#allocation2 + $0x4] sm:$0xff]
      %v1908 = vld [vmem:[#allocation2 + $0xc] sm:$0xff]
      %v1909 = vld [vmem:[#allocation2 + $0x14] sm:$0xff]
      %v1910 = vld [vmem:[#allocation2 + $0x1c] sm:$0xff]
      %v1911 = vld [vmem:[#allocation2 + $0x24] sm:$0xf]
      %1917 = vst [vmem:[#allocation1] ss:$2 sm:$0xff] %v1907
      %s1918 = scalar_lea.vmem [#allocation1], 16
      %1919 = vst [vmem:[%s1918] ss:$2 sm:$0xff] %v1908
      %s1920 = scalar_lea.vmem [#allocation1], 32
      %1921 = vst [vmem:[%s1920] ss:$2 sm:$0xff] %v1909
      %s1922 = scalar_lea.vmem [#allocation1], 48
      %1923 = vst [vmem:[%s1922] ss:$2 sm:$0xff] %v1910
      %v1924 = vld.sshfl [vmem:[#allocation1] sm:$0xff pattern:$0x75316420]
      %v1925 = vld.sshfl [vmem:[#allocation1 + $0x8] sm:$0xff pattern:$0x75316420]
      %v1926 = vld.sshfl [vmem:[#allocation1 + $0x10] sm:$0xff pattern:$0x75316420]
      %v1927 = vld.sshfl [vmem:[#allocation1 + $0x18] sm:$0xff pattern:$0x75316420]
      %v1928 = vld.sshfl [vmem:[#allocation1 + $0x20] sm:$0xff pattern:$0x75316420]
      %v1929 = vld.sshfl [vmem:[#allocation1 + $0x28] sm:$0xff pattern:$0x75316420]
      %v1930 = vld.sshfl [vmem:[#allocation1 + $0x30] sm:$0xff pattern:$0x75316420]
      %v1931 = vld.sshfl [vmem:[#allocation1 + $0x38] sm:$0xff pattern:$0x75316420]
      %1932 = vst [vmem:[#allocation1] ss:$2 sm:$0xff] %v1911
      %v1933 = vld.sshfl [vmem:[#allocation1] sm:$0xff pattern:$0x75316420]
      %1934 = vrot.lane.b32.xlu0 %v1924, 36
      %v1935 = vpop.permute.xlu0 %1934
      %1936 = vrot.lane.b32.xlu0 %v1925, 36
      %v1937 = vpop.permute.xlu0 %1936
      %1938 = vrot.lane.b32.xlu0 %v1926, 36
      %v1939 = vpop.permute.xlu0 %1938
      %1940 = vrot.lane.b32.xlu0 %v1927, 36
      %v1941 = vpop.permute.xlu0 %1940
      %1942 = vrot.lane.b32.xlu0 %v1928, 36
      %v1943 = vpop.permute.xlu0 %1942
      %1944 = vrot.lane.b32.xlu0 %v1929, 36
      %v1945 = vpop.permute.xlu0 %1944
      %1946 = vrot.lane.b32.xlu0 %v1930, 36
      %v1947 = vpop.permute.xlu0 %1946
      %1948 = vrot.lane.b32.xlu0 %v1931, 36
      %v1949 = vpop.permute.xlu0 %1948
      %1950 = vrot.lane.b32.xlu0 %v1933, 36
      %v1951 = vpop.permute.xlu0 %1950
      %vm1952 = vcmask 293888
      %v1953 = vsel %vm1952, %v1935, %v1937
      %v1954 = vsel %vm1952, %v1937, %v1939
      %v1955 = vsel %vm1952, %v1939, %v1941
      %v1956 = vsel %vm1952, %v1941, %v1943
      %v1957 = vsel %vm1952, %v1943, %v1945
      %v1958 = vsel %vm1952, %v1945, %v1947
      %v1959 = vsel %vm1952, %v1947, %v1949
      %v1960 = vsel %vm1952, %v1949, %v1951
      %1969 = vst [vmem:[#allocation3 + $0x300] sm:$0xf] %v1953
      %1970 = vst [vmem:[#allocation3 + $0x308] sm:$0xf] %v1954
      %1971 = vst [vmem:[#allocation3 + $0x310] sm:$0xf] %v1955
      %1972 = vst [vmem:[#allocation3 + $0x318] sm:$0xf] %v1956
      %1973 = vst [vmem:[#allocation3 + $0x320] sm:$0xf] %v1957
      %1974 = vst [vmem:[#allocation3 + $0x328] sm:$0xf] %v1958
      %1975 = vst [vmem:[#allocation3 + $0x330] sm:$0xf] %v1959
      %1976 = vst [vmem:[#allocation3 + $0x338] sm:$0xf] %v1960
      %v1977 = vld [vmem:[#allocation2 + $0x4] sm:$0xff]
      %v1978 = vld [vmem:[#allocation2 + $0xc] sm:$0xff]
      %v1979 = vld [vmem:[#allocation2 + $0x14] sm:$0xff]
      %v1980 = vld [vmem:[#allocation2 + $0x1c] sm:$0xff]
      %v1981 = vld [vmem:[#allocation2 + $0x24] sm:$0xf]
      %s1987 = scalar_lea.vmem [#allocation1], 1
      %1988 = vst [vmem:[%s1987] ss:$2 sm:$0xff] %v1977
      %s1989 = scalar_lea.vmem [#allocation1], 17
      %1990 = vst [vmem:[%s1989] ss:$2 sm:$0xff] %v1978
      %s1991 = scalar_lea.vmem [#allocation1], 33
      %1992 = vst [vmem:[%s1991] ss:$2 sm:$0xff] %v1979
      %s1993 = scalar_lea.vmem [#allocation1], 49
      %1994 = vst [vmem:[%s1993] ss:$2 sm:$0xff] %v1980
      %v1995 = vld.sshfl [vmem:[#allocation1] sm:$0xff pattern:$0x75316420]
      %v1996 = vld.sshfl [vmem:[#allocation1 + $0x8] sm:$0xff pattern:$0x75316420]
      %v1997 = vld.sshfl [vmem:[#allocation1 + $0x10] sm:$0xff pattern:$0x75316420]
      %v1998 = vld.sshfl [vmem:[#allocation1 + $0x18] sm:$0xff pattern:$0x75316420]
      %v1999 = vld.sshfl [vmem:[#allocation1 + $0x20] sm:$0xff pattern:$0x75316420]
      %v2000 = vld.sshfl [vmem:[#allocation1 + $0x28] sm:$0xff pattern:$0x75316420]
      %v2001 = vld.sshfl [vmem:[#allocation1 + $0x30] sm:$0xff pattern:$0x75316420]
      %v2002 = vld.sshfl [vmem:[#allocation1 + $0x38] sm:$0xff pattern:$0x75316420]
      %2003 = vst [vmem:[%s1987] ss:$2 sm:$0xff] %v1981
      %v2004 = vld.sshfl [vmem:[#allocation1] sm:$0xff pattern:$0x75316420]
      %2005 = vrot.lane.b32.xlu0 %v1995, 35
      %v2006 = vpop.permute.xlu0 %2005
      %2007 = vrot.lane.b32.xlu0 %v1996, 35
      %v2008 = vpop.permute.xlu0 %2007
      %2009 = vrot.lane.b32.xlu0 %v1997, 35
      %v2010 = vpop.permute.xlu0 %2009
      %2011 = vrot.lane.b32.xlu0 %v1998, 35
      %v2012 = vpop.permute.xlu0 %2011
      %2013 = vrot.lane.b32.xlu0 %v1999, 35
      %v2014 = vpop.permute.xlu0 %2013
      %2015 = vrot.lane.b32.xlu0 %v2000, 35
      %v2016 = vpop.permute.xlu0 %2015
      %2017 = vrot.lane.b32.xlu0 %v2001, 35
      %v2018 = vpop.permute.xlu0 %2017
      %2019 = vrot.lane.b32.xlu0 %v2002, 35
      %v2020 = vpop.permute.xlu0 %2019
      %2021 = vrot.lane.b32.xlu0 %v2004, 35
      %v2022 = vpop.permute.xlu0 %2021
      %vm2023 = vcmask 285696
      %v2024 = vsel %vm2023, %v2006, %v2008
      %v2025 = vsel %vm2023, %v2008, %v2010
      %v2026 = vsel %vm2023, %v2010, %v2012
      %v2027 = vsel %vm2023, %v2012, %v2014
      %v2028 = vsel %vm2023, %v2014, %v2016
      %v2029 = vsel %vm2023, %v2016, %v2018
      %v2030 = vsel %vm2023, %v2018, %v2020
      %v2031 = vsel %vm2023, %v2020, %v2022
      %2040 = vst [vmem:[#allocation3 + $0x300] sm:$0xf0] %v2024
      %2041 = vst [vmem:[#allocation3 + $0x308] sm:$0xf0] %v2025
      %2042 = vst [vmem:[#allocation3 + $0x310] sm:$0xf0] %v2026
      %2043 = vst [vmem:[#allocation3 + $0x318] sm:$0xf0] %v2027
      %2044 = vst [vmem:[#allocation3 + $0x320] sm:$0xf0] %v2028
      %2045 = vst [vmem:[#allocation3 + $0x328] sm:$0xf0] %v2029
      %2046 = vst [vmem:[#allocation3 + $0x330] sm:$0xf0] %v2030
      %2047 = vst [vmem:[#allocation3 + $0x338] sm:$0xf0] %v2031
      %v2048 = vld [vmem:[#allocation2 + $0x4] sm:$0xff]
      %v2049 = vld [vmem:[#allocation2 + $0xc] sm:$0xff]
      %v2050 = vld [vmem:[#allocation2 + $0x14] sm:$0xff]
      %v2051 = vld [vmem:[#allocation2 + $0x1c] sm:$0xff]
      %v2052 = vld [vmem:[#allocation2 + $0x24] sm:$0xf]
      %2058 = vst [vmem:[#allocation1] ss:$2 sm:$0xff] %v2048
      %s2059 = scalar_lea.vmem [#allocation1], 16
      %2060 = vst [vmem:[%s2059] ss:$2 sm:$0xff] %v2049
      %s2061 = scalar_lea.vmem [#allocation1], 32
      %2062 = vst [vmem:[%s2061] ss:$2 sm:$0xff] %v2050
      %s2063 = scalar_lea.vmem [#allocation1], 48
      %2064 = vst [vmem:[%s2063] ss:$2 sm:$0xff] %v2051
      %v2065 = vld.sshfl [vmem:[#allocation1] sm:$0xff pattern:$0x75316420]
      %v2066 = vld.sshfl [vmem:[#allocation1 + $0x8] sm:$0xff pattern:$0x75316420]
      %v2067 = vld.sshfl [vmem:[#allocation1 + $0x10] sm:$0xff pattern:$0x75316420]
      %v2068 = vld.sshfl [vmem:[#allocation1 + $0x18] sm:$0xff pattern:$0x75316420]
      %v2069 = vld.sshfl [vmem:[#allocation1 + $0x20] sm:$0xff pattern:$0x75316420]
      %v2070 = vld.sshfl [vmem:[#allocation1 + $0x28] sm:$0xff pattern:$0x75316420]
      %v2071 = vld.sshfl [vmem:[#allocation1 + $0x30] sm:$0xff pattern:$0x75316420]
      %v2072 = vld.sshfl [vmem:[#allocation1 + $0x38] sm:$0xff pattern:$0x75316420]
      %2073 = vst [vmem:[#allocation1] ss:$2 sm:$0xff] %v2052
      %v2074 = vld.sshfl [vmem:[#allocation1] sm:$0xff pattern:$0x75316420]
      %2075 = vrot.lane.b32.xlu0 %v2065, 34
      %v2076 = vpop.permute.xlu0 %2075
      %2077 = vrot.lane.b32.xlu0 %v2066, 34
      %v2078 = vpop.permute.xlu0 %2077
      %2079 = vrot.lane.b32.xlu0 %v2067, 34
      %v2080 = vpop.permute.xlu0 %2079
      %2081 = vrot.lane.b32.xlu0 %v2068, 34
      %v2082 = vpop.permute.xlu0 %2081
      %2083 = vrot.lane.b32.xlu0 %v2069, 34
      %v2084 = vpop.permute.xlu0 %2083
      %2085 = vrot.lane.b32.xlu0 %v2070, 34
      %v2086 = vpop.permute.xlu0 %2085
      %2087 = vrot.lane.b32.xlu0 %v2071, 34
      %v2088 = vpop.permute.xlu0 %2087
      %2089 = vrot.lane.b32.xlu0 %v2072, 34
      %v2090 = vpop.permute.xlu0 %2089
      %2091 = vrot.lane.b32.xlu0 %v2074, 34
      %v2092 = vpop.permute.xlu0 %2091
      %vm2093 = vcmask 277504
      %v2094 = vsel %vm2093, %v2076, %v2078
      %v2095 = vsel %vm2093, %v2078, %v2080
      %v2096 = vsel %vm2093, %v2080, %v2082
      %v2097 = vsel %vm2093, %v2082, %v2084
      %v2098 = vsel %vm2093, %v2084, %v2086
      %v2099 = vsel %vm2093, %v2086, %v2088
      %v2100 = vsel %vm2093, %v2088, %v2090
      %v2101 = vsel %vm2093, %v2090, %v2092
      %2110 = vst [vmem:[#allocation3 + $0x340] sm:$0xf] %v2094
      %2111 = vst [vmem:[#allocation3 + $0x348] sm:$0xf] %v2095
      %2112 = vst [vmem:[#allocation3 + $0x350] sm:$0xf] %v2096
      %2113 = vst [vmem:[#allocation3 + $0x358] sm:$0xf] %v2097
      %2114 = vst [vmem:[#allocation3 + $0x360] sm:$0xf] %v2098
      %2115 = vst [vmem:[#allocation3 + $0x368] sm:$0xf] %v2099
      %2116 = vst [vmem:[#allocation3 + $0x370] sm:$0xf] %v2100
      %2117 = vst [vmem:[#allocation3 + $0x378] sm:$0xf] %v2101
      %v2118 = vld [vmem:[%s2] sm:$0xff]
      %v2119 = vld [vmem:[#allocation3] sm:$0xff]
      %v2120 = vld [vmem:[#allocation3 + $0x8] sm:$0xff]
      %v2121 = vld [vmem:[#allocation3 + $0x10] sm:$0xff]
      %v2122 = vld [vmem:[#allocation3 + $0x18] sm:$0xff]
      %v2123 = vld [vmem:[#allocation3 + $0x20] sm:$0xff]
      %v2124 = vld [vmem:[#allocation3 + $0x28] sm:$0xff]
      %v2125 = vld [vmem:[#allocation3 + $0x30] sm:$0xff]
      %v2126 = vld [vmem:[#allocation3 + $0x38] sm:$0xff]
      %v2127 = vld [vmem:[#allocation3 + $0x40] sm:$0xff]
      %v2128 = vld [vmem:[#allocation3 + $0x48] sm:$0xff]
      %v2129 = vld [vmem:[#allocation3 + $0x50] sm:$0xff]
      %v2130 = vld [vmem:[#allocation3 + $0x58] sm:$0xff]
      %v2131 = vld [vmem:[#allocation3 + $0x60] sm:$0xff]
      %v2132 = vld [vmem:[#allocation3 + $0x68] sm:$0xff]
      %v2133 = vld [vmem:[#allocation3 + $0x70] sm:$0xff]
      %v2134 = vld [vmem:[#allocation3 + $0x78] sm:$0xff]
      %v2135 = vld [vmem:[#allocation3 + $0x80] sm:$0xff]
      %v2136 = vld [vmem:[#allocation3 + $0x88] sm:$0xff]
      %v2137 = vld [vmem:[#allocation3 + $0x90] sm:$0xff]
      %v2138 = vld [vmem:[#allocation3 + $0x98] sm:$0xff]
      %v2139 = vld [vmem:[#allocation3 + $0xa0] sm:$0xff]
      %v2140 = vld [vmem:[#allocation3 + $0xa8] sm:$0xff]
      %v2141 = vld [vmem:[#allocation3 + $0xb0] sm:$0xff]
      %v2142 = vld [vmem:[#allocation3 + $0xb8] sm:$0xff]
      %v2143 = vld [vmem:[#allocation3 + $0xc0] sm:$0xff]
      %v2144 = vld [vmem:[#allocation3 + $0xc8] sm:$0xff]
      %v2145 = vld [vmem:[#allocation3 + $0xd0] sm:$0xff]
      %v2146 = vld [vmem:[#allocation3 + $0xd8] sm:$0xff]
      %v2147 = vld [vmem:[#allocation3 + $0xe0] sm:$0xff]
      %v2148 = vld [vmem:[#allocation3 + $0xe8] sm:$0xff]
      %v2149 = vld [vmem:[#allocation3 + $0xf0] sm:$0xff]
      %v2150 = vld [vmem:[#allocation3 + $0xf8] sm:$0xff]
      %v2151 = vld [vmem:[#allocation3 + $0x100] sm:$0xff]
      %v2152 = vld [vmem:[#allocation3 + $0x108] sm:$0xff]
      %v2153 = vld [vmem:[#allocation3 + $0x110] sm:$0xff]
      %v2154 = vld [vmem:[#allocation3 + $0x118] sm:$0xff]
      %v2155 = vld [vmem:[#allocation3 + $0x120] sm:$0xff]
      %v2156 = vld [vmem:[#allocation3 + $0x128] sm:$0xff]
      %v2157 = vld [vmem:[#allocation3 + $0x130] sm:$0xff]
      %v2158 = vld [vmem:[#allocation3 + $0x138] sm:$0xff]
      %v2159 = vld [vmem:[#allocation3 + $0x140] sm:$0xff]
      %v2160 = vld [vmem:[#allocation3 + $0x148] sm:$0xff]
      %v2161 = vld [vmem:[#allocation3 + $0x150] sm:$0xff]
      %v2162 = vld [vmem:[#allocation3 + $0x158] sm:$0xff]
      %v2163 = vld [vmem:[#allocation3 + $0x160] sm:$0xff]
      %v2164 = vld [vmem:[#allocation3 + $0x168] sm:$0xff]
      %v2165 = vld [vmem:[#allocation3 + $0x170] sm:$0xff]
      %v2166 = vld [vmem:[#allocation3 + $0x178] sm:$0xff]
      %v2167 = vld [vmem:[#allocation3 + $0x180] sm:$0xff]
      %v2168 = vld [vmem:[#allocation3 + $0x188] sm:$0xff]
      %v2169 = vld [vmem:[#allocation3 + $0x190] sm:$0xff]
      %v2170 = vld [vmem:[#allocation3 + $0x198] sm:$0xff]
      %v2171 = vld [vmem:[#allocation3 + $0x1a0] sm:$0xff]
      %v2172 = vld [vmem:[#allocation3 + $0x1a8] sm:$0xff]
      %v2173 = vld [vmem:[#allocation3 + $0x1b0] sm:$0xff]
      %v2174 = vld [vmem:[#allocation3 + $0x1b8] sm:$0xff]
      %v2175 = vld [vmem:[#allocation3 + $0x1c0] sm:$0xff]
      %v2176 = vld [vmem:[#allocation3 + $0x1c8] sm:$0xff]
      %v2177 = vld [vmem:[#allocation3 + $0x1d0] sm:$0xff]
      %v2178 = vld [vmem:[#allocation3 + $0x1d8] sm:$0xff]
      %v2179 = vld [vmem:[#allocation3 + $0x1e0] sm:$0xff]
      %v2180 = vld [vmem:[#allocation3 + $0x1e8] sm:$0xff]
      %v2181 = vld [vmem:[#allocation3 + $0x1f0] sm:$0xff]
      %v2182 = vld [vmem:[#allocation3 + $0x1f8] sm:$0xff]
      %v2183 = vld [vmem:[#allocation3 + $0x200] sm:$0xff]
      %v2184 = vld [vmem:[#allocation3 + $0x208] sm:$0xff]
      %v2185 = vld [vmem:[#allocation3 + $0x210] sm:$0xff]
      %v2186 = vld [vmem:[#allocation3 + $0x218] sm:$0xff]
      %v2187 = vld [vmem:[#allocation3 + $0x220] sm:$0xff]
      %v2188 = vld [vmem:[#allocation3 + $0x228] sm:$0xff]
      %v2189 = vld [vmem:[#allocation3 + $0x230] sm:$0xff]
      %v2190 = vld [vmem:[#allocation3 + $0x238] sm:$0xff]
      %v2191 = vld [vmem:[#allocation3 + $0x240] sm:$0xff]
      %v2192 = vld [vmem:[#allocation3 + $0x248] sm:$0xff]
      %v2193 = vld [vmem:[#allocation3 + $0x250] sm:$0xff]
      %v2194 = vld [vmem:[#allocation3 + $0x258] sm:$0xff]
      %v2195 = vld [vmem:[#allocation3 + $0x260] sm:$0xff]
      %v2196 = vld [vmem:[#allocation3 + $0x268] sm:$0xff]
      %v2197 = vld [vmem:[#allocation3 + $0x270] sm:$0xff]
      %v2198 = vld [vmem:[#allocation3 + $0x278] sm:$0xff]
      %v2199 = vld [vmem:[#allocation3 + $0x280] sm:$0xff]
      %v2200 = vld [vmem:[#allocation3 + $0x288] sm:$0xff]
      %v2201 = vld [vmem:[#allocation3 + $0x290] sm:$0xff]
      %v2202 = vld [vmem:[#allocation3 + $0x298] sm:$0xff]
      %v2203 = vld [vmem:[#allocation3 + $0x2a0] sm:$0xff]
      %v2204 = vld [vmem:[#allocation3 + $0x2a8] sm:$0xff]
      %v2205 = vld [vmem:[#allocation3 + $0x2b0] sm:$0xff]
      %v2206 = vld [vmem:[#allocation3 + $0x2b8] sm:$0xff]
      %v2207 = vld [vmem:[#allocation3 + $0x2c0] sm:$0xff]
      %v2208 = vld [vmem:[#allocation3 + $0x2c8] sm:$0xff]
      %v2209 = vld [vmem:[#allocation3 + $0x2d0] sm:$0xff]
      %v2210 = vld [vmem:[#allocation3 + $0x2d8] sm:$0xff]
      %v2211 = vld [vmem:[#allocation3 + $0x2e0] sm:$0xff]
      %v2212 = vld [vmem:[#allocation3 + $0x2e8] sm:$0xff]
      %v2213 = vld [vmem:[#allocation3 + $0x2f0] sm:$0xff]
      %v2214 = vld [vmem:[#allocation3 + $0x2f8] sm:$0xff]
      %v2215 = vld [vmem:[#allocation3 + $0x300] sm:$0xff]
      %v2216 = vld [vmem:[#allocation3 + $0x308] sm:$0xff]
      %v2217 = vld [vmem:[#allocation3 + $0x310] sm:$0xff]
      %v2218 = vld [vmem:[#allocation3 + $0x318] sm:$0xff]
      %v2219 = vld [vmem:[#allocation3 + $0x320] sm:$0xff]
      %v2220 = vld [vmem:[#allocation3 + $0x328] sm:$0xff]
      %v2221 = vld [vmem:[#allocation3 + $0x330] sm:$0xff]
      %v2222 = vld [vmem:[#allocation3 + $0x338] sm:$0xff]
      %v2223 = vld [vmem:[#allocation3 + $0x340] sm:$0xf]
      %v2224 = vld [vmem:[#allocation3 + $0x348] sm:$0xf]
      %v2225 = vld [vmem:[#allocation3 + $0x350] sm:$0xf]
      %v2226 = vld [vmem:[#allocation3 + $0x358] sm:$0xf]
      %v2227 = vld [vmem:[#allocation3 + $0x360] sm:$0xf]
      %v2228 = vld [vmem:[#allocation3 + $0x368] sm:$0xf]
      %v2229 = vld [vmem:[#allocation3 + $0x370] sm:$0xf]
      %v2230 = vld [vmem:[#allocation3 + $0x378] sm:$0xf]
      %v2231 = vld [vmem:[%s3] sm:$0xff]
      %2233 = vset.pattern.permute.xlu0 0
      %2234 = vperm.xlu0 %2233, %v2231
      %v2235 = vpop.permute.xlu0 %2234
      %v2238 = vsel %vm683, %v2118, 0
      %vm2240 = vcmask 1043456
      %v2242 = vsel %vm2240, %v2223, 0
      %v2245 = vsel %vm2240, %v2224, 0
      %v2248 = vsel %vm2240, %v2225, 0
      %v2251 = vsel %vm2240, %v2226, 0
      %v2254 = vsel %vm2240, %v2227, 0
      %v2257 = vsel %vm2240, %v2228, 0
      %v2260 = vsel %vm2240, %v2229, 0
      %v2263 = vsel %vm2240, %v2230, 0
      %2265 = vmatpush.msra.mxu0 0.0
      %2266 = vmatpush.msra.mxu0 0.0
      %2267 = vmatpush.msra.mxu0 %v2242
      %2268 = vmatpush.msra.mxu0 %v2215
      %2269 = vmatpush.msra.mxu0 %v2207
      %2270 = vmatpush.msra.mxu0 %v2199
      %2271 = vmatpush.msra.mxu0 %v2191
      %2272 = vmatpush.msra.mxu0 %v2183
      %2273 = vmatpush.msra.mxu0 %v2175
      %2274 = vmatpush.msra.mxu0 %v2167
      %2275 = vmatpush.msra.mxu0 %v2159
      %2276 = vmatpush.msra.mxu0 %v2151
      %2277 = vmatpush.msra.mxu0 %v2143
      %2278 = vmatpush.msra.mxu0 %v2135
      %2279 = vmatpush.msra.mxu0 %v2127
      %2280 = vmatpush.msra.mxu0 %v2119
      %2281 = vmatmul.f32.gmra.mxu0 %v2238
      %v2282 = vpop.f32.mrf.mxu0
      %v2283 = vadd.f32 %v2235, %v2282
      %2284 = vdwg.mxu0
      %2285 = vmatpush.msra.mxu0 0.0
      %2286 = vmatpush.msra.mxu0 0.0
      %2287 = vmatpush.msra.mxu0 %v2245
      %2288 = vmatpush.msra.mxu0 %v2216
      %2289 = vmatpush.msra.mxu0 %v2208
      %2290 = vmatpush.msra.mxu0 %v2200
      %2291 = vmatpush.msra.mxu0 %v2192
      %2292 = vmatpush.msra.mxu0 %v2184
      %2293 = vmatpush.msra.mxu0 %v2176
      %2294 = vmatpush.msra.mxu0 %v2168
      %2295 = vmatpush.msra.mxu0 %v2160
      %2296 = vmatpush.msra.mxu0 %v2152
      %2297 = vmatpush.msra.mxu0 %v2144
      %2298 = vmatpush.msra.mxu0 %v2136
      %2299 = vmatpush.msra.mxu0 %v2128
      %2300 = vmatpush.msra.mxu0 %v2120
      %2301 = vmatmul.f32.gmra.mxu0 %v2238
      %v2302 = vpop.f32.mrf.mxu0
      %v2303 = vadd.f32 %v2235, %v2302
      %2304 = vdwg.mxu0
      %2305 = vmatpush.msra.mxu0 0.0
      %2306 = vmatpush.msra.mxu0 0.0
      %2307 = vmatpush.msra.mxu0 %v2248
      %2308 = vmatpush.msra.mxu0 %v2217
      %2309 = vmatpush.msra.mxu0 %v2209
      %2310 = vmatpush.msra.mxu0 %v2201
      %2311 = vmatpush.msra.mxu0 %v2193
      %2312 = vmatpush.msra.mxu0 %v2185
      %2313 = vmatpush.msra.mxu0 %v2177
      %2314 = vmatpush.msra.mxu0 %v2169
      %2315 = vmatpush.msra.mxu0 %v2161
      %2316 = vmatpush.msra.mxu0 %v2153
      %2317 = vmatpush.msra.mxu0 %v2145
      %2318 = vmatpush.msra.mxu0 %v2137
      %2319 = vmatpush.msra.mxu0 %v2129
      %2320 = vmatpush.msra.mxu0 %v2121
      %2321 = vmatmul.f32.gmra.mxu0 %v2238
      %v2322 = vpop.f32.mrf.mxu0
      %v2323 = vadd.f32 %v2235, %v2322
      %2324 = vdwg.mxu0
      %2325 = vmatpush.msra.mxu0 0.0
      %2326 = vmatpush.msra.mxu0 0.0
      %2327 = vmatpush.msra.mxu0 %v2251
      %2328 = vmatpush.msra.mxu0 %v2218
      %2329 = vmatpush.msra.mxu0 %v2210
      %2330 = vmatpush.msra.mxu0 %v2202
      %2331 = vmatpush.msra.mxu0 %v2194
      %2332 = vmatpush.msra.mxu0 %v2186
      %2333 = vmatpush.msra.mxu0 %v2178
      %2334 = vmatpush.msra.mxu0 %v2170
      %2335 = vmatpush.msra.mxu0 %v2162
      %2336 = vmatpush.msra.mxu0 %v2154
      %2337 = vmatpush.msra.mxu0 %v2146
      %2338 = vmatpush.msra.mxu0 %v2138
      %2339 = vmatpush.msra.mxu0 %v2130
      %2340 = vmatpush.msra.mxu0 %v2122
      %2341 = vmatmul.f32.gmra.mxu0 %v2238
      %v2342 = vpop.f32.mrf.mxu0
      %v2343 = vadd.f32 %v2235, %v2342
      %2344 = vdwg.mxu0
      %2345 = vmatpush.msra.mxu0 0.0
      %2346 = vmatpush.msra.mxu0 0.0
      %2347 = vmatpush.msra.mxu0 %v2254
      %2348 = vmatpush.msra.mxu0 %v2219
      %2349 = vmatpush.msra.mxu0 %v2211
      %2350 = vmatpush.msra.mxu0 %v2203
      %2351 = vmatpush.msra.mxu0 %v2195
      %2352 = vmatpush.msra.mxu0 %v2187
      %2353 = vmatpush.msra.mxu0 %v2179
      %2354 = vmatpush.msra.mxu0 %v2171
      %2355 = vmatpush.msra.mxu0 %v2163
      %2356 = vmatpush.msra.mxu0 %v2155
      %2357 = vmatpush.msra.mxu0 %v2147
      %2358 = vmatpush.msra.mxu0 %v2139
      %2359 = vmatpush.msra.mxu0 %v2131
      %2360 = vmatpush.msra.mxu0 %v2123
      %2361 = vmatmul.f32.gmra.mxu0 %v2238
      %v2362 = vpop.f32.mrf.mxu0
      %v2363 = vadd.f32 %v2235, %v2362
      %2364 = vdwg.mxu0
      %2365 = vmatpush.msra.mxu0 0.0
      %2366 = vmatpush.msra.mxu0 0.0
      %2367 = vmatpush.msra.mxu0 %v2257
      %2368 = vmatpush.msra.mxu0 %v2220
      %2369 = vmatpush.msra.mxu0 %v2212
      %2370 = vmatpush.msra.mxu0 %v2204
      %2371 = vmatpush.msra.mxu0 %v2196
      %2372 = vmatpush.msra.mxu0 %v2188
      %2373 = vmatpush.msra.mxu0 %v2180
      %2374 = vmatpush.msra.mxu0 %v2172
      %2375 = vmatpush.msra.mxu0 %v2164
      %2376 = vmatpush.msra.mxu0 %v2156
      %2377 = vmatpush.msra.mxu0 %v2148
      %2378 = vmatpush.msra.mxu0 %v2140
      %2379 = vmatpush.msra.mxu0 %v2132
      %2380 = vmatpush.msra.mxu0 %v2124
      %2381 = vmatmul.f32.gmra.mxu0 %v2238
      %v2382 = vpop.f32.mrf.mxu0
      %v2383 = vadd.f32 %v2235, %v2382
      %2384 = vdwg.mxu0
      %2385 = vmatpush.msra.mxu0 0.0
      %2386 = vmatpush.msra.mxu0 0.0
      %2387 = vmatpush.msra.mxu0 %v2260
      %2388 = vmatpush.msra.mxu0 %v2221
      %2389 = vmatpush.msra.mxu0 %v2213
      %2390 = vmatpush.msra.mxu0 %v2205
      %2391 = vmatpush.msra.mxu0 %v2197
      %2392 = vmatpush.msra.mxu0 %v2189
      %2393 = vmatpush.msra.mxu0 %v2181
      %2394 = vmatpush.msra.mxu0 %v2173
      %2395 = vmatpush.msra.mxu0 %v2165
      %2396 = vmatpush.msra.mxu0 %v2157
      %2397 = vmatpush.msra.mxu0 %v2149
      %2398 = vmatpush.msra.mxu0 %v2141
      %2399 = vmatpush.msra.mxu0 %v2133
      %2400 = vmatpush.msra.mxu0 %v2125
      %2401 = vmatmul.f32.gmra.mxu0 %v2238
      %v2402 = vpop.f32.mrf.mxu0
      %v2403 = vadd.f32 %v2235, %v2402
      %2404 = vdwg.mxu0
      %2405 = vmatpush.msra.mxu0 0.0
      %2406 = vmatpush.msra.mxu0 0.0
      %2407 = vmatpush.msra.mxu0 %v2263
      %2408 = vmatpush.msra.mxu0 %v2222
      %2409 = vmatpush.msra.mxu0 %v2214
      %2410 = vmatpush.msra.mxu0 %v2206
      %2411 = vmatpush.msra.mxu0 %v2198
      %2412 = vmatpush.msra.mxu0 %v2190
      %2413 = vmatpush.msra.mxu0 %v2182
      %2414 = vmatpush.msra.mxu0 %v2174
      %2415 = vmatpush.msra.mxu0 %v2166
      %2416 = vmatpush.msra.mxu0 %v2158
      %2417 = vmatpush.msra.mxu0 %v2150
      %2418 = vmatpush.msra.mxu0 %v2142
      %2419 = vmatpush.msra.mxu0 %v2134
      %2420 = vmatpush.msra.mxu0 %v2126
      %2421 = vmatmul.f32.gmra.mxu0 %v2238
      %v2422 = vpop.f32.mrf.mxu0
      %v2423 = vadd.f32 %v2235, %v2422
      %2424 = vdwg.mxu0
      %2425 = vst [vmem:[%s228] sm:$0xff] %v2283
      %2426 = vst [vmem:[%s228 + $0x8] sm:$0xff] %v2303
      %2427 = vst [vmem:[%s228 + $0x10] sm:$0xff] %v2323
      %2428 = vst [vmem:[%s228 + $0x18] sm:$0xff] %v2343
      %2429 = vst [vmem:[%s228 + $0x20] sm:$0xff] %v2363
      %2430 = vst [vmem:[%s228 + $0x28] sm:$0xff] %v2383
      %2431 = vst [vmem:[%s228 + $0x30] sm:$0xff] %v2403
      %2432 = vst [vmem:[%s228 + $0x38] sm:$0xff] %v2423
      %s2433 = smul.u32 8, %s15
      %p2434 = scmp.lt.s32.totalorder %s2433, 15
      %s2435 = scalar_select %p2434, %s2433, 15
      %s2436 = smul.addr %s2435, 8
      %s2437 = scalar_lea.vmem %s4, %s2436
      // Predicated region
      $region37: #{channel_code_forward.1} parent=35 // pred_check
        %p2438 = pneg %p129
      $region38: #{channel_code_forward.1} parent=35 // pred_check_branch
        %2440 = sbr.rel (%p2438) target = $region40
      $region39: #{channel_code_forward.1} parent=35 // pred_region
        %s2441 = smul.u32 8, %s15
      $region40: #{channel_code_forward.1} parent=35 // pred_fallthru
        _
    $region36: #{channel_code_forward.1} parent=5 // pred_fallthru
      _
    %p2442 = scmp.le.s32.totalorder 2, %s10
    // Predicated region
    $region41: #{channel_code_forward.1} parent=5 // pred_check
      %p2443 = pneg %p2442
    $region42: #{channel_code_forward.1} parent=5 // pred_check_branch
      %2445 = sbr.rel (%p2443) target = $region44
    $region43: #{channel_code_forward.1} parent=5 // pred_region
      %s2446 = ssub.s32 %s10, 2
      // Predicated region
      $region45: #{channel_code_forward.1} parent=43 // pred_check
        %p2447 = pneg %p135
      $region46: #{channel_code_forward.1} parent=43 // pred_check_branch
        %2449 = sbr.rel (%p2447) target = $region48
      $region47: #{channel_code_forward.1} parent=43 // pred_region
        %s2450 = smul.u32 8, %s16
        %p2451 = scmp.lt.s32.totalorder %s2450, 15
        %s2452 = scalar_select %p2451, %s2450, 15
        %s2453 = smul.addr %s2452, 8
        %s2454 = scalar_lea.vmem %s4, %s2453
      $region48: #{channel_code_forward.1} parent=43 // pred_fallthru
        _
    $region44: #{channel_code_forward.1} parent=5 // pred_fallthru
      _
  $region6: #{channel_code_forward.1} parent=0 // loop_footer
    %s14 = sadd.s32 1, %s10
  $region7: #{channel_code_forward.1} parent=0 // loop_footer_branch
    %9 = sbr.rel target = $region3
  $region8: #{channel_code_forward.1} parent=0 // loop_exit
    _

</llo_original>
